<compile_context>
chip_gen: v6e
topology: v6e:2x2x1
jax: 0.10.0
libtpu: 0.0.40
codegen_flags: <defaults>
</compile_context>

<pallas_src>
import functools

import jax
import jax.numpy as jnp
from jax.experimental import pallas as pl
from jax.experimental.pallas import tpu as pltpu

LANE = 128
_NEG_LARGE = -1e30  # finite "-inf" for masking padded logit lanes


def _round_up(n, m):
    return ((n + m - 1) // m) * m


def _pad2(a, rows, cols, dtype):
    return jnp.pad(a, ((0, rows - a.shape[0]), (0, cols - a.shape[1]))).astype(dtype)


def viterbinet_kernel(x_ref, w1_ref, b1_ref, w2_ref, b2_ref, w3_ref, b3_ref,
                      o_ref, *, d_out):
    """Fused 3-layer MLP + tanh + relu + log_softmax for one batch tile.

    Matmul inputs are bf16 (MXU-native), accumulation and all elementwise /
    transcendental / reduction math is float32.
    """
    x = x_ref[...]  # bf16 [tile, 128]

    # fc1 + tanh
    h1 = jnp.dot(x, w1_ref[...], preferred_element_type=jnp.float32) + b1_ref[...]
    h1 = jnp.tanh(h1)

    # fc2 + relu
    h2 = jnp.dot(h1.astype(jnp.bfloat16), w2_ref[...],
                 preferred_element_type=jnp.float32) + b2_ref[...]
    h2 = jnp.maximum(h2, 0.0)

    # fc3 + log_softmax over the last axis (PyTorch default dim for 2D input).
    logits = jnp.dot(h2.astype(jnp.bfloat16), w3_ref[...],
                     preferred_element_type=jnp.float32) + b3_ref[...]

    # Mask the lanes that only exist because of the 128-lane padding so they do
    # not perturb max / sum-exp.
    col = jax.lax.broadcasted_iota(jnp.int32, logits.shape, 1)
    logits = jnp.where(col < d_out, logits, _NEG_LARGE)

    m = jnp.max(logits, axis=-1, keepdims=True)
    shifted = logits - m
    lse = jnp.log(jnp.sum(jnp.exp(shifted), axis=-1, keepdims=True))
    o_ref[...] = (shifted - lse).astype(o_ref.dtype)


def viterbinet_forward(x, params, *, batch_tile=512):
    """x: [B, D_in] float32. params: dict of (w1,b1,w2,b2,w3,b3), W stored [in, out]."""
    B, D_in = x.shape
    w1, b1, w2, b2, w3, b3 = (params[k] for k in ("w1", "b1", "w2", "b2", "w3", "b3"))
    H1 = w1.shape[1]
    H2 = w2.shape[1]
    D_out = w3.shape[1]

    # Pad every feature dim to a multiple of 128 lanes and the batch to a
    # multiple of the batch tile (zero padding; padded rows are sliced off).
    D_in_p = _round_up(D_in, LANE)
    H1_p = _round_up(H1, LANE)
    H2_p = _round_up(H2, LANE)
    D_out_p = _round_up(D_out, LANE)
    B_p = _round_up(B, batch_tile)

    x_p = jnp.pad(x, ((0, B_p - B), (0, D_in_p - D_in))).astype(jnp.bfloat16)
    w1_p = _pad2(w1, D_in_p, H1_p, jnp.bfloat16)
    w2_p = _pad2(w2, H1_p, H2_p, jnp.bfloat16)
    w3_p = _pad2(w3, H2_p, D_out_p, jnp.bfloat16)
    b1_p = _pad2(b1, 1, H1_p, jnp.float32)
    b2_p = _pad2(b2, 1, H2_p, jnp.float32)
    b3_p = _pad2(b3, 1, D_out_p, jnp.float32)

    grid = (pl.cdiv(B_p, batch_tile),)
    rep2 = lambda i: (0, 0)  # weights/biases: same block every grid step (VMEM resident)

    # VMEM footprint per step (batch_tile=512): x bf16 128 KiB + out f32 256 KiB
    # (double-buffered) + ~0.6 MiB of weights -> well inside v7x's 32 MiB scoped
    # default; no vmem_limit_bytes override needed unless batch_tile >> 8192.
    out_padded = pl.pallas_call(
        functools.partial(viterbinet_kernel, d_out=D_out),
        out_shape=jax.ShapeDtypeStruct((B_p, D_out_p), jnp.float32),
        grid_spec=pltpu.PrefetchScalarGridSpec(
            num_scalar_prefetch=0,
            grid=grid,
            in_specs=[
                pl.BlockSpec((batch_tile, D_in_p), lambda i: (i, 0)),  # x tile (streams)
                pl.BlockSpec((D_in_p, H1_p), rep2),                    # w1
                pl.BlockSpec((1, H1_p), rep2),                         # b1
                pl.BlockSpec((H1_p, H2_p), rep2),                      # w2
                pl.BlockSpec((1, H2_p), rep2),                         # b2
                pl.BlockSpec((H2_p, D_out_p), rep2),                   # w3
                pl.BlockSpec((1, D_out_p), rep2),                      # b3
            ],
            out_specs=pl.BlockSpec((batch_tile, D_out_p), lambda i: (i, 0)),
        ),
        compiler_params=pltpu.CompilerParams(dimension_semantics=("parallel",)),
    )(x_p, w1_p, b1_p, w2_p, b2_p, w3_p, b3_p)

    return out_padded[:B, :D_out]


def init_params(key, D_in, H1, H2, D_out):
    """Deterministic synthetic init (uniform like PyTorch Linear default bounds)."""
    ks = jax.random.split(key, 6)

    def lin(kw, kb, fan_in, fan_out):
        bound = 1.0 / jnp.sqrt(fan_in)
        # stored as [in, out] so the kernel computes x @ W
        w = jax.random.uniform(kw, (fan_in, fan_out), jnp.float32, -bound, bound)
        b = jax.random.uniform(kb, (1, fan_out), jnp.float32, -bound, bound)
        return w, b

    w1, b1 = lin(ks[0], ks[1], D_in, H1)
    w2, b2 = lin(ks[2], ks[3], H1, H2)
    w3, b3 = lin(ks[4], ks[5], H2, D_out)
    return {"w1": w1, "b1": b1, "w2": w2, "b2": b2, "w3": w3, "b3": b3}


def reference_forward(x, p):
    h1 = jnp.tanh(x @ p["w1"] + p["b1"])
    h2 = jax.nn.relu(h1 @ p["w2"] + p["b2"])
    logits = h2 @ p["w3"] + p["b3"]
    return jax.nn.log_softmax(logits, axis=-1)


if __name__ == "__main__":
    # Small shapes consistent with the module: D_in=16, H1=32, H2=32, D_out=16, batch=16.
    B, D_in, H1, H2, D_out = 16, 16, 32, 32, 16

    key = jax.random.PRNGKey(0)
    kx, kp = jax.random.split(key)
    x = jax.random.normal(kx, (B, D_in), jnp.float32)
    params = init_params(kp, D_in, H1, H2, D_out)

    out = viterbinet_forward(x, params, batch_tile=512)
    out = jax.block_until_ready(out)

    ref = reference_forward(x, params)
    assert out.shape == (B, D_out)
    # bf16 matmul inputs (f32 accumulation) -> relaxed tolerance vs the f32 reference.
    assert jnp.allclose(out, ref, atol=5e-2, rtol=5e-2), "mismatch vs JAX reference"

    print("KERNEL_OK")
</pallas_src>

<mosaic_0001>
module attributes {stable_mosaic.version = 11 : i64} {
  func.func @viterbinet_kernel(%arg0: i32, %arg1: memref<512x128xbf16, #tpu.memory_space<vmem>>, %arg2: memref<128x128xbf16, #tpu.memory_space<vmem>>, %arg3: memref<1x128xf32, #tpu.memory_space<vmem>>, %arg4: memref<128x128xbf16, #tpu.memory_space<vmem>>, %arg5: memref<1x128xf32, #tpu.memory_space<vmem>>, %arg6: memref<128x128xbf16, #tpu.memory_space<vmem>>, %arg7: memref<1x128xf32, #tpu.memory_space<vmem>>, %arg8: memref<512x128xf32, #tpu.memory_space<vmem>>) attributes {dimension_semantics = [#tpu.dimension_semantics<parallel>], iteration_bounds = array<i64: 1>, scalar_prefetch = 0 : i64, scratch_operands = 0 : i64, tpu.core_type = #tpu.core_type<tc>, window_params = [{transform_indices = @transform_0, window_bounds = array<i64: 512, 128>}, {pipeline_mode = #tpu.pipeline_mode<synchronous>, transform_indices = @transform_1, window_bounds = array<i64: 128, 128>}, {pipeline_mode = #tpu.pipeline_mode<synchronous>, transform_indices = @transform_2, window_bounds = array<i64: 1, 128>}, {pipeline_mode = #tpu.pipeline_mode<synchronous>, transform_indices = @transform_3, window_bounds = array<i64: 128, 128>}, {pipeline_mode = #tpu.pipeline_mode<synchronous>, transform_indices = @transform_4, window_bounds = array<i64: 1, 128>}, {pipeline_mode = #tpu.pipeline_mode<synchronous>, transform_indices = @transform_5, window_bounds = array<i64: 128, 128>}, {pipeline_mode = #tpu.pipeline_mode<synchronous>, transform_indices = @transform_6, window_bounds = array<i64: 1, 128>}, {transform_indices = @transform_7, window_bounds = array<i64: 512, 128>}]} {
    %c0 = arith.constant 0 : index
    %c0_0 = arith.constant 0 : index
    %0 = vector.load %arg1[%c0, %c0_0] : memref<512x128xbf16, #tpu.memory_space<vmem>>, vector<512x128xbf16>
    %c0_1 = arith.constant 0 : index
    %c0_2 = arith.constant 0 : index
    %1 = vector.load %arg2[%c0_1, %c0_2] : memref<128x128xbf16, #tpu.memory_space<vmem>>, vector<128x128xbf16>
    %cst = arith.constant dense<0.000000e+00> : vector<512x128xf32>
    %2 = tpu.matmul %0, %1, %cst {dimension_numbers = #tpu.dot_dimension_numbers<[1], [0], [0], [1], [0, 0, 1, 1], [], []>} : vector<512x128xbf16>, vector<128x128xbf16>, vector<512x128xf32> -> vector<512x128xf32>
    %c0_3 = arith.constant 0 : index
    %c0_4 = arith.constant 0 : index
    %3 = vector.load %arg3[%c0_3, %c0_4] : memref<1x128xf32, #tpu.memory_space<vmem>>, vector<1x128xf32>
    %4 = vector.broadcast %3 : vector<1x128xf32> to vector<512x128xf32>
    %5 = arith.addf %2, %4 : vector<512x128xf32>
    %6 = math.tanh %5 : vector<512x128xf32>
    %7 = arith.truncf %6 : vector<512x128xf32> to vector<512x128xbf16>
    %c0_5 = arith.constant 0 : index
    %c0_6 = arith.constant 0 : index
    %8 = vector.load %arg4[%c0_5, %c0_6] : memref<128x128xbf16, #tpu.memory_space<vmem>>, vector<128x128xbf16>
    %cst_7 = arith.constant dense<0.000000e+00> : vector<512x128xf32>
    %9 = tpu.matmul %7, %8, %cst_7 {dimension_numbers = #tpu.dot_dimension_numbers<[1], [0], [0], [1], [0, 0, 1, 1], [], []>} : vector<512x128xbf16>, vector<128x128xbf16>, vector<512x128xf32> -> vector<512x128xf32>
    %c0_8 = arith.constant 0 : index
    %c0_9 = arith.constant 0 : index
    %10 = vector.load %arg5[%c0_8, %c0_9] : memref<1x128xf32, #tpu.memory_space<vmem>>, vector<1x128xf32>
    %11 = vector.broadcast %10 : vector<1x128xf32> to vector<512x128xf32>
    %12 = arith.addf %9, %11 : vector<512x128xf32>
    %cst_10 = arith.constant 0.000000e+00 : f32
    %13 = vector.broadcast %cst_10 : f32 to vector<512x128xf32>
    %14 = arith.maximumf %12, %13 : vector<512x128xf32>
    %15 = arith.truncf %14 : vector<512x128xf32> to vector<512x128xbf16>
    %c0_11 = arith.constant 0 : index
    %c0_12 = arith.constant 0 : index
    %16 = vector.load %arg6[%c0_11, %c0_12] : memref<128x128xbf16, #tpu.memory_space<vmem>>, vector<128x128xbf16>
    %cst_13 = arith.constant dense<0.000000e+00> : vector<512x128xf32>
    %17 = tpu.matmul %15, %16, %cst_13 {dimension_numbers = #tpu.dot_dimension_numbers<[1], [0], [0], [1], [0, 0, 1, 1], [], []>} : vector<512x128xbf16>, vector<128x128xbf16>, vector<512x128xf32> -> vector<512x128xf32>
    %c0_14 = arith.constant 0 : index
    %c0_15 = arith.constant 0 : index
    %18 = vector.load %arg7[%c0_14, %c0_15] : memref<1x128xf32, #tpu.memory_space<vmem>>, vector<1x128xf32>
    %19 = vector.broadcast %18 : vector<1x128xf32> to vector<512x128xf32>
    %20 = arith.addf %17, %19 : vector<512x128xf32>
    %21 = tpu.iota {dimensions = array<i32: 1>} : vector<512x128xi32>
    %c16_i32 = arith.constant 16 : i32
    %22 = vector.broadcast %c16_i32 : i32 to vector<512x128xi32>
    %23 = arith.cmpi slt, %21, %22 : vector<512x128xi32>
    %cst_16 = arith.constant -1.000000e+30 : f32
    %24 = vector.broadcast %cst_16 : f32 to vector<512x128xf32>
    %25 = arith.select %23, %20, %24 : vector<512x128xi1>, vector<512x128xf32>
    %cst_17 = arith.constant dense<0xFF800000> : vector<512xf32>
    %26 = vector.multi_reduction <maximumf>, %25, %cst_17 [1] : vector<512x128xf32> to vector<512xf32>
    %27 = vector.shape_cast %26 : vector<512xf32> to vector<512x1xf32>
    %28 = vector.broadcast %27 : vector<512x1xf32> to vector<512x128xf32>
    %29 = arith.subf %25, %28 : vector<512x128xf32>
    %30 = math.exp %29 : vector<512x128xf32>
    %cst_18 = arith.constant dense<0.000000e+00> : vector<512xf32>
    %31 = vector.multi_reduction <add>, %30, %cst_18 [1] : vector<512x128xf32> to vector<512xf32>
    %32 = vector.shape_cast %31 : vector<512xf32> to vector<512x1xf32>
    %33 = math.log %32 : vector<512x1xf32>
    %34 = vector.broadcast %33 : vector<512x1xf32> to vector<512x128xf32>
    %35 = arith.subf %29, %34 : vector<512x128xf32>
    %c0_19 = arith.constant 0 : index
    %c0_20 = arith.constant 0 : index
    %36 = vector.load %arg8[%c0_19, %c0_20] : memref<512x128xf32, #tpu.memory_space<vmem>>, vector<512x128xf32>
    tpu.vector_store %arg8[%c0_19, %c0_20], %35 {strides = array<i32>} : memref<512x128xf32, #tpu.memory_space<vmem>>, vector<512x128xf32>,
    return
  }
  func.func @transform_0(%arg0: i32) -> (i32, i32) {
    %c0_i32 = arith.constant 0 : i32
    %c0_i32_0 = arith.constant 0 : i32
    return %arg0, %c0_i32 : i32, i32
  }
  func.func @transform_1(%arg0: i32) -> (i32, i32) {
    %c0_i32 = arith.constant 0 : i32
    %c0_i32_0 = arith.constant 0 : i32
    %c0_i32_1 = arith.constant 0 : i32
    return %c0_i32, %c0_i32_0 : i32, i32
  }
  func.func @transform_2(%arg0: i32) -> (i32, i32) {
    %c0_i32 = arith.constant 0 : i32
    %c0_i32_0 = arith.constant 0 : i32
    %c0_i32_1 = arith.constant 0 : i32
    return %c0_i32, %c0_i32_0 : i32, i32
  }
  func.func @transform_3(%arg0: i32) -> (i32, i32) {
    %c0_i32 = arith.constant 0 : i32
    %c0_i32_0 = arith.constant 0 : i32
    %c0_i32_1 = arith.constant 0 : i32
    return %c0_i32, %c0_i32_0 : i32, i32
  }
  func.func @transform_4(%arg0: i32) -> (i32, i32) {
    %c0_i32 = arith.constant 0 : i32
    %c0_i32_0 = arith.constant 0 : i32
    %c0_i32_1 = arith.constant 0 : i32
    return %c0_i32, %c0_i32_0 : i32, i32
  }
  func.func @transform_5(%arg0: i32) -> (i32, i32) {
    %c0_i32 = arith.constant 0 : i32
    %c0_i32_0 = arith.constant 0 : i32
    %c0_i32_1 = arith.constant 0 : i32
    return %c0_i32, %c0_i32_0 : i32, i32
  }
  func.func @transform_6(%arg0: i32) -> (i32, i32) {
    %c0_i32 = arith.constant 0 : i32
    %c0_i32_0 = arith.constant 0 : i32
    %c0_i32_1 = arith.constant 0 : i32
    return %c0_i32, %c0_i32_0 : i32, i32
  }
  func.func @transform_7(%arg0: i32) -> (i32, i32) {
    %c0_i32 = arith.constant 0 : i32
    %c0_i32_0 = arith.constant 0 : i32
    return %arg0, %c0_i32 : i32, i32
  }
}

</mosaic_0001>

<llo_original>
// kernel: tpu_custom_call.1
$region0: #{tpu_custom_call.1}
  #allocation0 [shape = 'u32[]', space=smem, size = 0x4, offset = 0x4, fixed_abs, tag = 'smem constant byte address 0x4 - core index']
  #allocation1 [shape = 'u32[144,128]{1,0:T(1,128)}', space=vmem, size = 0x12000, scoped, tag = 'internal scratch']
  %s0 = inlined_call_operand.hbm [shape: bf16[512,128], index: 0, kind: input, shape index: {}]
  %s1 = inlined_call_operand.hbm [shape: bf16[128,128], index: 1, kind: input, shape index: {}]
  %s2 = inlined_call_operand.vmem [shape: f32[1,128], index: 2, kind: input, shape index: {}]
  %s3 = inlined_call_operand.hbm [shape: bf16[128,128], index: 3, kind: input, shape index: {}]
  %s4 = inlined_call_operand.vmem [shape: f32[1,128], index: 4, kind: input, shape index: {}]
  %s5 = inlined_call_operand.hbm [shape: bf16[128,128], index: 5, kind: input, shape index: {}]
  %s6 = inlined_call_operand.vmem [shape: f32[1,128], index: 6, kind: input, shape index: {}]
  %s7 = inlined_call_operand.hbm [shape: f32[512,128], index: 7, kind: output, shape index: {}]
  %s8 = sld [smem:[#allocation0]]
  $region54: #{tpu_custom_call.1} parent=0
    _
  %s10 = ssub.s32 1, %s8
  %s11 = scalar_select 0, %s10, %s8
  $region1: #{tpu_custom_call.1} parent=0
    #allocation2 [shape = 'u8[131072]{0}', space=vmem, size = 0x20000, scoped, tag = 'input window, operand 0, single buffered']
    #allocation3 [shape = 's32[1]{0}', space=sflag, size = 0x4, scoped, tag = 'scoped memory for tpu_custom_call.1']
    #allocation4 [shape = 's32[1]{0}', space=sflag, size = 0x4, scoped, tag = 'scoped memory for tpu_custom_call.1']
    #allocation5 [shape = 'u8[32768]{0}', space=vmem, size = 0x8000, scoped, tag = 'input window, operand 1, single buffered']
    #allocation6 [shape = 's32[1]{0}', space=sflag, size = 0x4, scoped, tag = 'scoped memory for tpu_custom_call.1']
    #allocation7 [shape = 'u8[32768]{0}', space=vmem, size = 0x8000, scoped, tag = 'input window, operand 3, single buffered']
    #allocation8 [shape = 'u8[32768]{0}', space=vmem, size = 0x8000, scoped, tag = 'input window, operand 5, single buffered']
    #allocation9 [shape = 's32[1]{0}', space=sflag, size = 0x4, scoped, tag = 'scoped memory for tpu_custom_call.1']
    #allocation10 [shape = 'u8[262144]{0}', space=vmem, size = 0x40000, scoped, tag = 'output window, operand 0, single buffered']
    %12 = vsyncpa [#allocation3], 0
    %13 = vsyncpa [#allocation6], 0
    %14 = vsyncpa [#allocation9], 0
    %15 = vsyncpa [#allocation4], 0
    // Predicated region
    $region2: #{tpu_custom_call.1} parent=1 // pred_check
      _
    $region3: #{tpu_custom_call.1} parent=1 // pred_check_branch
      %17 = sbr.rel (0) target = $region5
    $region4: #{tpu_custom_call.1} parent=1 // pred_region
      %s19 = ssub.s32 4096, 4096
      %20 = vsyncadd [#allocation3], %s19
      %s21 = sshll.u32 [#allocation2], 4
      %s22 = int_to_ptr.vmem [resolvable:$true] %s21
      %27 = dma.hbm_to_vmem [thread:$0]  %s0, 4096, %s22, [#allocation3], 64, 64, 4
    $region5: #{tpu_custom_call.1} parent=1 // pred_fallthru
      _
    // Predicated region
    $region6: #{tpu_custom_call.1} parent=1 // pred_check
      _
    $region7: #{tpu_custom_call.1} parent=1 // pred_check_branch
      %29 = sbr.rel (0) target = $region9
    $region8: #{tpu_custom_call.1} parent=1 // pred_region
      %s31 = ssub.s32 1024, 1024
      %32 = vsyncadd [#allocation6], %s31
      %s33 = sshll.u32 [#allocation5], 4
      %s34 = int_to_ptr.vmem [resolvable:$true] %s33
      %39 = dma.hbm_to_vmem [thread:$0]  %s1, 1024, %s34, [#allocation6], 64, 64, 4
    $region9: #{tpu_custom_call.1} parent=1 // pred_fallthru
      _
    // Predicated region
    $region10: #{tpu_custom_call.1} parent=1 // pred_check
      _
    $region11: #{tpu_custom_call.1} parent=1 // pred_check_branch
      %41 = sbr.rel (0) target = $region13
    $region12: #{tpu_custom_call.1} parent=1 // pred_region
      _
    $region13: #{tpu_custom_call.1} parent=1 // pred_fallthru
      _
    // Predicated region
    $region14: #{tpu_custom_call.1} parent=1 // pred_check
      _
    $region15: #{tpu_custom_call.1} parent=1 // pred_check_branch
      %43 = sbr.rel (0) target = $region17
    $region16: #{tpu_custom_call.1} parent=1 // pred_region
      %s45 = ssub.s32 1024, 1024
      %46 = vsyncadd [#allocation6], %s45
      %s47 = sshll.u32 [#allocation7], 4
      %s48 = int_to_ptr.vmem [resolvable:$true] %s47
      %53 = dma.hbm_to_vmem [thread:$0]  %s3, 1024, %s48, [#allocation6], 64, 64, 4
    $region17: #{tpu_custom_call.1} parent=1 // pred_fallthru
      _
    // Predicated region
    $region18: #{tpu_custom_call.1} parent=1 // pred_check
      _
    $region19: #{tpu_custom_call.1} parent=1 // pred_check_branch
      %55 = sbr.rel (0) target = $region21
    $region20: #{tpu_custom_call.1} parent=1 // pred_region
      _
    $region21: #{tpu_custom_call.1} parent=1 // pred_fallthru
      _
    // Predicated region
    $region22: #{tpu_custom_call.1} parent=1 // pred_check
      _
    $region23: #{tpu_custom_call.1} parent=1 // pred_check_branch
      %57 = sbr.rel (0) target = $region25
    $region24: #{tpu_custom_call.1} parent=1 // pred_region
      %s59 = ssub.s32 1024, 1024
      %60 = vsyncadd [#allocation9], %s59
      %s61 = sshll.u32 [#allocation8], 4
      %s62 = int_to_ptr.vmem [resolvable:$true] %s61
      %67 = dma.hbm_to_vmem [thread:$0]  %s5, 1024, %s62, [#allocation9], 64, 64, 4
    $region25: #{tpu_custom_call.1} parent=1 // pred_fallthru
      _
    // Predicated region
    $region26: #{tpu_custom_call.1} parent=1 // pred_check
      _
    $region27: #{tpu_custom_call.1} parent=1 // pred_check_branch
      %69 = sbr.rel (0) target = $region29
    $region28: #{tpu_custom_call.1} parent=1 // pred_region
      _
    $region29: #{tpu_custom_call.1} parent=1 // pred_fallthru
      _
    // Predicated region
    $region30: #{tpu_custom_call.1} parent=1 // pred_check
      _
    $region31: #{tpu_custom_call.1} parent=1 // pred_check_branch
      %71 = sbr.rel (0) target = $region33
    $region32: #{tpu_custom_call.1} parent=1 // pred_region
      %72 = dma.done [#allocation3], 4096
    $region33: #{tpu_custom_call.1} parent=1 // pred_fallthru
      _
    // Predicated region
    $region34: #{tpu_custom_call.1} parent=1 // pred_check
      _
    $region35: #{tpu_custom_call.1} parent=1 // pred_check_branch
      %74 = sbr.rel (0) target = $region37
    $region36: #{tpu_custom_call.1} parent=1 // pred_region
      %75 = dma.done [#allocation6], 1024
    $region37: #{tpu_custom_call.1} parent=1 // pred_fallthru
      _
    // Predicated region
    $region38: #{tpu_custom_call.1} parent=1 // pred_check
      _
    $region39: #{tpu_custom_call.1} parent=1 // pred_check_branch
      %77 = sbr.rel (0) target = $region41
    $region40: #{tpu_custom_call.1} parent=1 // pred_region
      %78 = dma.done [#allocation6], 1024
    $region41: #{tpu_custom_call.1} parent=1 // pred_fallthru
      _
    // Predicated region
    $region42: #{tpu_custom_call.1} parent=1 // pred_check
      _
    $region43: #{tpu_custom_call.1} parent=1 // pred_check_branch
      %80 = sbr.rel (0) target = $region45
    $region44: #{tpu_custom_call.1} parent=1 // pred_region
      %81 = dma.done [#allocation9], 1024
    $region45: #{tpu_custom_call.1} parent=1 // pred_fallthru
      _
    %v83 = vld [vmem:[#allocation2] sm:$0xf]
    %v84 = vld [vmem:[#allocation2 + $0x4] sm:$0xf]
    %v85 = vld [vmem:[#allocation2 + $0x8] sm:$0xf]
    %v86 = vld [vmem:[#allocation2 + $0xc] sm:$0xf]
    %v87 = vld [vmem:[#allocation2 + $0x10] sm:$0xf]
    %v88 = vld [vmem:[#allocation2 + $0x14] sm:$0xf]
    %v89 = vld [vmem:[#allocation2 + $0x18] sm:$0xf]
    %v90 = vld [vmem:[#allocation2 + $0x1c] sm:$0xf]
    %v91 = vld [vmem:[#allocation2 + $0x20] sm:$0xf]
    %v92 = vld [vmem:[#allocation2 + $0x24] sm:$0xf]
    %v93 = vld [vmem:[#allocation2 + $0x28] sm:$0xf]
    %v94 = vld [vmem:[#allocation2 + $0x2c] sm:$0xf]
    %v95 = vld [vmem:[#allocation2 + $0x30] sm:$0xf]
    %v96 = vld [vmem:[#allocation2 + $0x34] sm:$0xf]
    %v97 = vld [vmem:[#allocation2 + $0x38] sm:$0xf]
    %v98 = vld [vmem:[#allocation2 + $0x3c] sm:$0xf]
    %v99 = vld [vmem:[#allocation2 + $0x40] sm:$0xf]
    %v100 = vld [vmem:[#allocation2 + $0x44] sm:$0xf]
    %v101 = vld [vmem:[#allocation2 + $0x48] sm:$0xf]
    %v102 = vld [vmem:[#allocation2 + $0x4c] sm:$0xf]
    %v103 = vld [vmem:[#allocation2 + $0x50] sm:$0xf]
    %v104 = vld [vmem:[#allocation2 + $0x54] sm:$0xf]
    %v105 = vld [vmem:[#allocation2 + $0x58] sm:$0xf]
    %v106 = vld [vmem:[#allocation2 + $0x5c] sm:$0xf]
    %v107 = vld [vmem:[#allocation2 + $0x60] sm:$0xf]
    %v108 = vld [vmem:[#allocation2 + $0x64] sm:$0xf]
    %v109 = vld [vmem:[#allocation2 + $0x68] sm:$0xf]
    %v110 = vld [vmem:[#allocation2 + $0x6c] sm:$0xf]
    %v111 = vld [vmem:[#allocation2 + $0x70] sm:$0xf]
    %v112 = vld [vmem:[#allocation2 + $0x74] sm:$0xf]
    %v113 = vld [vmem:[#allocation2 + $0x78] sm:$0xf]
    %v114 = vld [vmem:[#allocation2 + $0x7c] sm:$0xf]
    %v115 = vld [vmem:[#allocation2 + $0x80] sm:$0xf]
    %v116 = vld [vmem:[#allocation2 + $0x84] sm:$0xf]
    %v117 = vld [vmem:[#allocation2 + $0x88] sm:$0xf]
    %v118 = vld [vmem:[#allocation2 + $0x8c] sm:$0xf]
    %v119 = vld [vmem:[#allocation2 + $0x90] sm:$0xf]
    %v120 = vld [vmem:[#allocation2 + $0x94] sm:$0xf]
    %v121 = vld [vmem:[#allocation2 + $0x98] sm:$0xf]
    %v122 = vld [vmem:[#allocation2 + $0x9c] sm:$0xf]
    %v123 = vld [vmem:[#allocation2 + $0xa0] sm:$0xf]
    %v124 = vld [vmem:[#allocation2 + $0xa4] sm:$0xf]
    %v125 = vld [vmem:[#allocation2 + $0xa8] sm:$0xf]
    %v126 = vld [vmem:[#allocation2 + $0xac] sm:$0xf]
    %v127 = vld [vmem:[#allocation2 + $0xb0] sm:$0xf]
    %v128 = vld [vmem:[#allocation2 + $0xb4] sm:$0xf]
    %v129 = vld [vmem:[#allocation2 + $0xb8] sm:$0xf]
    %v130 = vld [vmem:[#allocation2 + $0xbc] sm:$0xf]
    %v131 = vld [vmem:[#allocation2 + $0xc0] sm:$0xf]
    %v132 = vld [vmem:[#allocation2 + $0xc4] sm:$0xf]
    %v133 = vld [vmem:[#allocation2 + $0xc8] sm:$0xf]
    %v134 = vld [vmem:[#allocation2 + $0xcc] sm:$0xf]
    %v135 = vld [vmem:[#allocation2 + $0xd0] sm:$0xf]
    %v136 = vld [vmem:[#allocation2 + $0xd4] sm:$0xf]
    %v137 = vld [vmem:[#allocation2 + $0xd8] sm:$0xf]
    %v138 = vld [vmem:[#allocation2 + $0xdc] sm:$0xf]
    %v139 = vld [vmem:[#allocation2 + $0xe0] sm:$0xf]
    %v140 = vld [vmem:[#allocation2 + $0xe4] sm:$0xf]
    %v141 = vld [vmem:[#allocation2 + $0xe8] sm:$0xf]
    %v142 = vld [vmem:[#allocation2 + $0xec] sm:$0xf]
    %v143 = vld [vmem:[#allocation2 + $0xf0] sm:$0xf]
    %v144 = vld [vmem:[#allocation2 + $0xf4] sm:$0xf]
    %v145 = vld [vmem:[#allocation2 + $0xf8] sm:$0xf]
    %v146 = vld [vmem:[#allocation2 + $0xfc] sm:$0xf]
    %v147 = vld [vmem:[#allocation5] sm:$0xf]
    %v148 = vld [vmem:[#allocation5 + $0x4] sm:$0xf]
    %v149 = vld [vmem:[#allocation5 + $0x8] sm:$0xf]
    %v150 = vld [vmem:[#allocation5 + $0xc] sm:$0xf]
    %v151 = vld [vmem:[#allocation5 + $0x10] sm:$0xf]
    %v152 = vld [vmem:[#allocation5 + $0x14] sm:$0xf]
    %v153 = vld [vmem:[#allocation5 + $0x18] sm:$0xf]
    %v154 = vld [vmem:[#allocation5 + $0x1c] sm:$0xf]
    %v155 = vld [vmem:[#allocation5 + $0x20] sm:$0xf]
    %v156 = vld [vmem:[#allocation5 + $0x24] sm:$0xf]
    %v157 = vld [vmem:[#allocation5 + $0x28] sm:$0xf]
    %v158 = vld [vmem:[#allocation5 + $0x2c] sm:$0xf]
    %v159 = vld [vmem:[#allocation5 + $0x30] sm:$0xf]
    %v160 = vld [vmem:[#allocation5 + $0x34] sm:$0xf]
    %v161 = vld [vmem:[#allocation5 + $0x38] sm:$0xf]
    %v162 = vld [vmem:[#allocation5 + $0x3c] sm:$0xf]
    %v163 = vld [vmem:[%s2] sm:$0x1]
    %v165 = vlaneseq
    %v166 = vshrl.u32 %v165, 7
    %v167 = vsub.s32 0, %v166
    %v168 = vrot.slane %v163, %v167
    %v234 = vunpack.c.l.b16 %v83
    %v235 = vunpack.c.l.b16 %v84
    %v236 = vunpack.c.l.b16 %v85
    %v237 = vunpack.c.l.b16 %v86
    %v238 = vunpack.c.l.b16 %v87
    %v239 = vunpack.c.l.b16 %v88
    %v240 = vunpack.c.l.b16 %v89
    %v241 = vunpack.c.l.b16 %v90
    %v242 = vunpack.c.l.b16 %v91
    %v243 = vunpack.c.l.b16 %v92
    %v244 = vunpack.c.l.b16 %v93
    %v245 = vunpack.c.l.b16 %v94
    %v246 = vunpack.c.l.b16 %v95
    %v247 = vunpack.c.l.b16 %v96
    %v248 = vunpack.c.l.b16 %v97
    %v249 = vunpack.c.l.b16 %v98
    %v250 = vunpack.c.l.b16 %v99
    %v251 = vunpack.c.l.b16 %v100
    %v252 = vunpack.c.l.b16 %v101
    %v253 = vunpack.c.l.b16 %v102
    %v254 = vunpack.c.l.b16 %v103
    %v255 = vunpack.c.l.b16 %v104
    %v256 = vunpack.c.l.b16 %v105
    %v257 = vunpack.c.l.b16 %v106
    %v258 = vunpack.c.l.b16 %v107
    %v259 = vunpack.c.l.b16 %v108
    %v260 = vunpack.c.l.b16 %v109
    %v261 = vunpack.c.l.b16 %v110
    %v262 = vunpack.c.l.b16 %v111
    %v263 = vunpack.c.l.b16 %v112
    %v264 = vunpack.c.l.b16 %v113
    %v265 = vunpack.c.l.b16 %v114
    %v266 = vunpack.c.l.b16 %v115
    %v267 = vunpack.c.l.b16 %v116
    %v268 = vunpack.c.l.b16 %v117
    %v269 = vunpack.c.l.b16 %v118
    %v270 = vunpack.c.l.b16 %v119
    %v271 = vunpack.c.l.b16 %v120
    %v272 = vunpack.c.l.b16 %v121
    %v273 = vunpack.c.l.b16 %v122
    %v274 = vunpack.c.l.b16 %v123
    %v275 = vunpack.c.l.b16 %v124
    %v276 = vunpack.c.l.b16 %v125
    %v277 = vunpack.c.l.b16 %v126
    %v278 = vunpack.c.l.b16 %v127
    %v279 = vunpack.c.l.b16 %v128
    %v280 = vunpack.c.l.b16 %v129
    %v281 = vunpack.c.l.b16 %v130
    %v282 = vunpack.c.l.b16 %v131
    %v283 = vunpack.c.l.b16 %v132
    %v284 = vunpack.c.l.b16 %v133
    %v285 = vunpack.c.l.b16 %v134
    %v286 = vunpack.c.l.b16 %v135
    %v287 = vunpack.c.l.b16 %v136
    %v288 = vunpack.c.l.b16 %v137
    %v289 = vunpack.c.l.b16 %v138
    %v290 = vunpack.c.l.b16 %v139
    %v291 = vunpack.c.l.b16 %v140
    %v292 = vunpack.c.l.b16 %v141
    %v293 = vunpack.c.l.b16 %v142
    %v294 = vunpack.c.l.b16 %v143
    %v295 = vunpack.c.l.b16 %v144
    %v296 = vunpack.c.l.b16 %v145
    %v297 = vunpack.c.l.b16 %v146
    %v298 = vpack.c.b16 %v235, %v234
    %v299 = vpack.c.b16 %v237, %v236
    %v300 = vpack.c.b16 %v239, %v238
    %v301 = vpack.c.b16 %v241, %v240
    %v302 = vpack.c.b16 %v243, %v242
    %v303 = vpack.c.b16 %v245, %v244
    %v304 = vpack.c.b16 %v247, %v246
    %v305 = vpack.c.b16 %v249, %v248
    %v306 = vpack.c.b16 %v251, %v250
    %v307 = vpack.c.b16 %v253, %v252
    %v308 = vpack.c.b16 %v255, %v254
    %v309 = vpack.c.b16 %v257, %v256
    %v310 = vpack.c.b16 %v259, %v258
    %v311 = vpack.c.b16 %v261, %v260
    %v312 = vpack.c.b16 %v263, %v262
    %v313 = vpack.c.b16 %v265, %v264
    %v314 = vpack.c.b16 %v267, %v266
    %v315 = vpack.c.b16 %v269, %v268
    %v316 = vpack.c.b16 %v271, %v270
    %v317 = vpack.c.b16 %v273, %v272
    %v318 = vpack.c.b16 %v275, %v274
    %v319 = vpack.c.b16 %v277, %v276
    %v320 = vpack.c.b16 %v279, %v278
    %v321 = vpack.c.b16 %v281, %v280
    %v322 = vpack.c.b16 %v283, %v282
    %v323 = vpack.c.b16 %v285, %v284
    %v324 = vpack.c.b16 %v287, %v286
    %v325 = vpack.c.b16 %v289, %v288
    %v326 = vpack.c.b16 %v291, %v290
    %v327 = vpack.c.b16 %v293, %v292
    %v328 = vpack.c.b16 %v295, %v294
    %v329 = vpack.c.b16 %v297, %v296
    %v378 = vunpack.c.l.b16 %v147
    %v379 = vunpack.c.l.b16 %v148
    %v380 = vunpack.c.l.b16 %v149
    %v381 = vunpack.c.l.b16 %v150
    %v382 = vunpack.c.l.b16 %v151
    %v383 = vunpack.c.l.b16 %v152
    %v384 = vunpack.c.l.b16 %v153
    %v385 = vunpack.c.l.b16 %v154
    %v386 = vunpack.c.l.b16 %v155
    %v387 = vunpack.c.l.b16 %v156
    %v388 = vunpack.c.l.b16 %v157
    %v389 = vunpack.c.l.b16 %v158
    %v390 = vunpack.c.l.b16 %v159
    %v391 = vunpack.c.l.b16 %v160
    %v392 = vunpack.c.l.b16 %v161
    %v393 = vunpack.c.l.b16 %v162
    %v394 = vpack.c.b16 %v379, %v378
    %v395 = vpack.c.b16 %v381, %v380
    %v396 = vpack.c.b16 %v383, %v382
    %v397 = vpack.c.b16 %v385, %v384
    %v398 = vpack.c.b16 %v387, %v386
    %v399 = vpack.c.b16 %v389, %v388
    %v400 = vpack.c.b16 %v391, %v390
    %v401 = vpack.c.b16 %v393, %v392
    %410 = vmatprep.subr.bf16.mxu0 0
    %411 = vmatpush1.bf16.msra.mxu0 %v401
    %412 = vmatprep.subr.bf16.mxu0 0
    %413 = vmatpush1.bf16.msra.mxu0 %v400
    %414 = vmatprep.subr.bf16.mxu0 0
    %415 = vmatpush1.bf16.msra.mxu0 %v399
    %416 = vmatprep.subr.bf16.mxu0 0
    %417 = vmatpush1.bf16.msra.mxu0 %v398
    %418 = vmatprep.subr.bf16.mxu0 0
    %419 = vmatpush1.bf16.msra.mxu0 %v397
    %420 = vmatprep.subr.bf16.mxu0 0
    %421 = vmatpush1.bf16.msra.mxu0 %v396
    %422 = vmatprep.subr.bf16.mxu0 0
    %423 = vmatpush1.bf16.msra.mxu0 %v395
    %424 = vmatprep.subr.bf16.mxu0 0
    %425 = vmatpush1.bf16.msra.mxu0 %v394
    %426 = vmatprep.subr.bf16.mxu0 0
    %427 = vmatpush2.bf16.msra.mxu0 0
    %428 = vmatprep.subr.bf16.mxu0 0
    %429 = vmatpush2.bf16.msra.mxu0 0
    %430 = vmatprep.subr.bf16.mxu0 0
    %431 = vmatpush2.bf16.msra.mxu0 0
    %432 = vmatprep.subr.bf16.mxu0 0
    %433 = vmatpush2.bf16.msra.mxu0 0
    %434 = vmatprep.subr.bf16.mxu0 0
    %435 = vmatpush2.bf16.msra.mxu0 0
    %436 = vmatprep.subr.bf16.mxu0 0
    %437 = vmatpush2.bf16.msra.mxu0 0
    %438 = vmatprep.subr.bf16.mxu0 0
    %439 = vmatpush2.bf16.msra.mxu0 0
    %440 = vmatprep.subr.bf16.mxu0 0
    %441 = vmatpush2.bf16.msra.mxu0 0
    %442 = vmatprep.mubr.bf16.mxu0 0
    %443 = vmatmul.mubr.bf16.gmra.mxu0 %v298
    %v444 = vpop.f32.mrf.mxu0
    %v445 = vadd.f32 %v168, %v444
    %v446 = vpop.f32.mrf.mxu0
    %v447 = vpop.f32.mrf.mxu0
    %v448 = vadd.f32 %v168, %v447
    %v449 = vpop.f32.mrf.mxu0
    %450 = vmatprep.mubr.bf16.mxu0 0
    %451 = vmatmul.mubr.bf16.gmra.mxu0 %v299
    %v452 = vpop.f32.mrf.mxu0
    %v453 = vadd.f32 %v168, %v452
    %v454 = vpop.f32.mrf.mxu0
    %v455 = vpop.f32.mrf.mxu0
    %v456 = vadd.f32 %v168, %v455
    %v457 = vpop.f32.mrf.mxu0
    %458 = vmatprep.mubr.bf16.mxu0 0
    %459 = vmatmul.mubr.bf16.gmra.mxu0 %v300
    %v460 = vpop.f32.mrf.mxu0
    %v461 = vadd.f32 %v168, %v460
    %v462 = vpop.f32.mrf.mxu0
    %v463 = vpop.f32.mrf.mxu0
    %v464 = vadd.f32 %v168, %v463
    %v465 = vpop.f32.mrf.mxu0
    %466 = vmatprep.mubr.bf16.mxu0 0
    %467 = vmatmul.mubr.bf16.gmra.mxu0 %v301
    %v468 = vpop.f32.mrf.mxu0
    %v469 = vadd.f32 %v168, %v468
    %v470 = vpop.f32.mrf.mxu0
    %v471 = vpop.f32.mrf.mxu0
    %v472 = vadd.f32 %v168, %v471
    %v473 = vpop.f32.mrf.mxu0
    %474 = vmatprep.mubr.bf16.mxu0 0
    %475 = vmatmul.mubr.bf16.gmra.mxu0 %v302
    %v476 = vpop.f32.mrf.mxu0
    %v477 = vadd.f32 %v168, %v476
    %v478 = vpop.f32.mrf.mxu0
    %v479 = vpop.f32.mrf.mxu0
    %v480 = vadd.f32 %v168, %v479
    %v481 = vpop.f32.mrf.mxu0
    %482 = vmatprep.mubr.bf16.mxu0 0
    %483 = vmatmul.mubr.bf16.gmra.mxu0 %v303
    %v484 = vpop.f32.mrf.mxu0
    %v485 = vadd.f32 %v168, %v484
    %v486 = vpop.f32.mrf.mxu0
    %v487 = vpop.f32.mrf.mxu0
    %v488 = vadd.f32 %v168, %v487
    %v489 = vpop.f32.mrf.mxu0
    %490 = vmatprep.mubr.bf16.mxu0 0
    %491 = vmatmul.mubr.bf16.gmra.mxu0 %v304
    %v492 = vpop.f32.mrf.mxu0
    %v493 = vadd.f32 %v168, %v492
    %v494 = vpop.f32.mrf.mxu0
    %v495 = vpop.f32.mrf.mxu0
    %v496 = vadd.f32 %v168, %v495
    %v497 = vpop.f32.mrf.mxu0
    %498 = vmatprep.mubr.bf16.mxu0 0
    %499 = vmatmul.mubr.bf16.gmra.mxu0 %v305
    %v500 = vpop.f32.mrf.mxu0
    %v501 = vadd.f32 %v168, %v500
    %v502 = vpop.f32.mrf.mxu0
    %v503 = vpop.f32.mrf.mxu0
    %v504 = vadd.f32 %v168, %v503
    %v505 = vpop.f32.mrf.mxu0
    %506 = vmatprep.mubr.bf16.mxu0 0
    %507 = vmatmul.mubr.bf16.gmra.mxu0 %v306
    %v508 = vpop.f32.mrf.mxu0
    %v509 = vadd.f32 %v168, %v508
    %v510 = vpop.f32.mrf.mxu0
    %v511 = vpop.f32.mrf.mxu0
    %v512 = vadd.f32 %v168, %v511
    %v513 = vpop.f32.mrf.mxu0
    %514 = vmatprep.mubr.bf16.mxu0 0
    %515 = vmatmul.mubr.bf16.gmra.mxu0 %v307
    %v516 = vpop.f32.mrf.mxu0
    %v517 = vadd.f32 %v168, %v516
    %v518 = vpop.f32.mrf.mxu0
    %v519 = vpop.f32.mrf.mxu0
    %v520 = vadd.f32 %v168, %v519
    %v521 = vpop.f32.mrf.mxu0
    %522 = vmatprep.mubr.bf16.mxu0 0
    %523 = vmatmul.mubr.bf16.gmra.mxu0 %v308
    %v524 = vpop.f32.mrf.mxu0
    %v525 = vadd.f32 %v168, %v524
    %v526 = vpop.f32.mrf.mxu0
    %v527 = vpop.f32.mrf.mxu0
    %v528 = vadd.f32 %v168, %v527
    %v529 = vpop.f32.mrf.mxu0
    %530 = vmatprep.mubr.bf16.mxu0 0
    %531 = vmatmul.mubr.bf16.gmra.mxu0 %v309
    %v532 = vpop.f32.mrf.mxu0
    %v533 = vadd.f32 %v168, %v532
    %v534 = vpop.f32.mrf.mxu0
    %v535 = vpop.f32.mrf.mxu0
    %v536 = vadd.f32 %v168, %v535
    %v537 = vpop.f32.mrf.mxu0
    %538 = vmatprep.mubr.bf16.mxu0 0
    %539 = vmatmul.mubr.bf16.gmra.mxu0 %v310
    %v540 = vpop.f32.mrf.mxu0
    %v541 = vadd.f32 %v168, %v540
    %v542 = vpop.f32.mrf.mxu0
    %v543 = vpop.f32.mrf.mxu0
    %v544 = vadd.f32 %v168, %v543
    %v545 = vpop.f32.mrf.mxu0
    %546 = vmatprep.mubr.bf16.mxu0 0
    %547 = vmatmul.mubr.bf16.gmra.mxu0 %v311
    %v548 = vpop.f32.mrf.mxu0
    %v549 = vadd.f32 %v168, %v548
    %v550 = vpop.f32.mrf.mxu0
    %v551 = vpop.f32.mrf.mxu0
    %v552 = vadd.f32 %v168, %v551
    %v553 = vpop.f32.mrf.mxu0
    %554 = vmatprep.mubr.bf16.mxu0 0
    %555 = vmatmul.mubr.bf16.gmra.mxu0 %v312
    %v556 = vpop.f32.mrf.mxu0
    %v557 = vadd.f32 %v168, %v556
    %v558 = vpop.f32.mrf.mxu0
    %v559 = vpop.f32.mrf.mxu0
    %v560 = vadd.f32 %v168, %v559
    %v561 = vpop.f32.mrf.mxu0
    %562 = vmatprep.mubr.bf16.mxu0 0
    %563 = vmatmul.mubr.bf16.gmra.mxu0 %v313
    %v564 = vpop.f32.mrf.mxu0
    %v565 = vadd.f32 %v168, %v564
    %v566 = vpop.f32.mrf.mxu0
    %v567 = vpop.f32.mrf.mxu0
    %v568 = vadd.f32 %v168, %v567
    %v569 = vpop.f32.mrf.mxu0
    %570 = vmatprep.mubr.bf16.mxu0 0
    %571 = vmatmul.mubr.bf16.gmra.mxu0 %v314
    %v572 = vpop.f32.mrf.mxu0
    %v573 = vadd.f32 %v168, %v572
    %v574 = vpop.f32.mrf.mxu0
    %v575 = vpop.f32.mrf.mxu0
    %v576 = vadd.f32 %v168, %v575
    %v577 = vpop.f32.mrf.mxu0
    %578 = vmatprep.mubr.bf16.mxu0 0
    %579 = vmatmul.mubr.bf16.gmra.mxu0 %v315
    %v580 = vpop.f32.mrf.mxu0
    %v581 = vadd.f32 %v168, %v580
    %v582 = vpop.f32.mrf.mxu0
    %v583 = vpop.f32.mrf.mxu0
    %v584 = vadd.f32 %v168, %v583
    %v585 = vpop.f32.mrf.mxu0
    %586 = vmatprep.mubr.bf16.mxu0 0
    %587 = vmatmul.mubr.bf16.gmra.mxu0 %v316
    %v588 = vpop.f32.mrf.mxu0
    %v589 = vadd.f32 %v168, %v588
    %v590 = vpop.f32.mrf.mxu0
    %v591 = vpop.f32.mrf.mxu0
    %v592 = vadd.f32 %v168, %v591
    %v593 = vpop.f32.mrf.mxu0
    %594 = vmatprep.mubr.bf16.mxu0 0
    %595 = vmatmul.mubr.bf16.gmra.mxu0 %v317
    %v596 = vpop.f32.mrf.mxu0
    %v597 = vadd.f32 %v168, %v596
    %v598 = vpop.f32.mrf.mxu0
    %v599 = vpop.f32.mrf.mxu0
    %v600 = vadd.f32 %v168, %v599
    %v601 = vpop.f32.mrf.mxu0
    %602 = vmatprep.mubr.bf16.mxu0 0
    %603 = vmatmul.mubr.bf16.gmra.mxu0 %v318
    %v604 = vpop.f32.mrf.mxu0
    %v605 = vadd.f32 %v168, %v604
    %v606 = vpop.f32.mrf.mxu0
    %v607 = vpop.f32.mrf.mxu0
    %v608 = vadd.f32 %v168, %v607
    %v609 = vpop.f32.mrf.mxu0
    %610 = vmatprep.mubr.bf16.mxu0 0
    %611 = vmatmul.mubr.bf16.gmra.mxu0 %v319
    %v612 = vpop.f32.mrf.mxu0
    %v613 = vadd.f32 %v168, %v612
    %v614 = vpop.f32.mrf.mxu0
    %v615 = vpop.f32.mrf.mxu0
    %v616 = vadd.f32 %v168, %v615
    %v617 = vpop.f32.mrf.mxu0
    %618 = vmatprep.mubr.bf16.mxu0 0
    %619 = vmatmul.mubr.bf16.gmra.mxu0 %v320
    %v620 = vpop.f32.mrf.mxu0
    %v621 = vadd.f32 %v168, %v620
    %v622 = vpop.f32.mrf.mxu0
    %v623 = vpop.f32.mrf.mxu0
    %v624 = vadd.f32 %v168, %v623
    %v625 = vpop.f32.mrf.mxu0
    %626 = vmatprep.mubr.bf16.mxu0 0
    %627 = vmatmul.mubr.bf16.gmra.mxu0 %v321
    %v628 = vpop.f32.mrf.mxu0
    %v629 = vadd.f32 %v168, %v628
    %v630 = vpop.f32.mrf.mxu0
    %v631 = vpop.f32.mrf.mxu0
    %v632 = vadd.f32 %v168, %v631
    %v633 = vpop.f32.mrf.mxu0
    %634 = vmatprep.mubr.bf16.mxu0 0
    %635 = vmatmul.mubr.bf16.gmra.mxu0 %v322
    %v636 = vpop.f32.mrf.mxu0
    %v637 = vadd.f32 %v168, %v636
    %v638 = vpop.f32.mrf.mxu0
    %v639 = vpop.f32.mrf.mxu0
    %v640 = vadd.f32 %v168, %v639
    %v641 = vpop.f32.mrf.mxu0
    %642 = vmatprep.mubr.bf16.mxu0 0
    %643 = vmatmul.mubr.bf16.gmra.mxu0 %v323
    %v644 = vpop.f32.mrf.mxu0
    %v645 = vadd.f32 %v168, %v644
    %v646 = vpop.f32.mrf.mxu0
    %v647 = vpop.f32.mrf.mxu0
    %v648 = vadd.f32 %v168, %v647
    %v649 = vpop.f32.mrf.mxu0
    %650 = vmatprep.mubr.bf16.mxu0 0
    %651 = vmatmul.mubr.bf16.gmra.mxu0 %v324
    %v652 = vpop.f32.mrf.mxu0
    %v653 = vadd.f32 %v168, %v652
    %v654 = vpop.f32.mrf.mxu0
    %v655 = vpop.f32.mrf.mxu0
    %v656 = vadd.f32 %v168, %v655
    %v657 = vpop.f32.mrf.mxu0
    %658 = vmatprep.mubr.bf16.mxu0 0
    %659 = vmatmul.mubr.bf16.gmra.mxu0 %v325
    %v660 = vpop.f32.mrf.mxu0
    %v661 = vadd.f32 %v168, %v660
    %v662 = vpop.f32.mrf.mxu0
    %v663 = vpop.f32.mrf.mxu0
    %v664 = vadd.f32 %v168, %v663
    %v665 = vpop.f32.mrf.mxu0
    %666 = vmatprep.mubr.bf16.mxu0 0
    %667 = vmatmul.mubr.bf16.gmra.mxu0 %v326
    %v668 = vpop.f32.mrf.mxu0
    %v669 = vadd.f32 %v168, %v668
    %v670 = vpop.f32.mrf.mxu0
    %v671 = vpop.f32.mrf.mxu0
    %v672 = vadd.f32 %v168, %v671
    %v673 = vpop.f32.mrf.mxu0
    %674 = vmatprep.mubr.bf16.mxu0 0
    %675 = vmatmul.mubr.bf16.gmra.mxu0 %v327
    %v676 = vpop.f32.mrf.mxu0
    %v677 = vadd.f32 %v168, %v676
    %v678 = vpop.f32.mrf.mxu0
    %v679 = vpop.f32.mrf.mxu0
    %v680 = vadd.f32 %v168, %v679
    %v681 = vpop.f32.mrf.mxu0
    %682 = vmatprep.mubr.bf16.mxu0 0
    %683 = vmatmul.mubr.bf16.gmra.mxu0 %v328
    %v684 = vpop.f32.mrf.mxu0
    %v685 = vadd.f32 %v168, %v684
    %v686 = vpop.f32.mrf.mxu0
    %v687 = vpop.f32.mrf.mxu0
    %v688 = vadd.f32 %v168, %v687
    %v689 = vpop.f32.mrf.mxu0
    %690 = vmatprep.mubr.bf16.mxu0 0
    %691 = vmatmul.mubr.bf16.gmra.mxu0 %v329
    %v692 = vpop.f32.mrf.mxu0
    %v693 = vadd.f32 %v168, %v692
    %v694 = vpop.f32.mrf.mxu0
    %v695 = vpop.f32.mrf.mxu0
    %v696 = vadd.f32 %v168, %v695
    %v697 = vpop.f32.mrf.mxu0
    %698 = vdwg.mxu0
    %v699 = vtanh.pop %v445
    %v700 = vtanh.pop %v448
    %v701 = vtanh.pop %v453
    %v702 = vtanh.pop %v456
    %v703 = vtanh.pop %v461
    %v704 = vtanh.pop %v464
    %v705 = vtanh.pop %v469
    %v706 = vtanh.pop %v472
    %v707 = vtanh.pop %v477
    %v708 = vtanh.pop %v480
    %v709 = vtanh.pop %v485
    %v710 = vtanh.pop %v488
    %v711 = vtanh.pop %v493
    %v712 = vtanh.pop %v496
    %v713 = vtanh.pop %v501
    %v714 = vtanh.pop %v504
    %v715 = vtanh.pop %v509
    %v716 = vtanh.pop %v512
    %v717 = vtanh.pop %v517
    %v718 = vtanh.pop %v520
    %v719 = vtanh.pop %v525
    %v720 = vtanh.pop %v528
    %v721 = vtanh.pop %v533
    %v722 = vtanh.pop %v536
    %v723 = vtanh.pop %v541
    %v724 = vtanh.pop %v544
    %v725 = vtanh.pop %v549
    %v726 = vtanh.pop %v552
    %v727 = vtanh.pop %v557
    %v728 = vtanh.pop %v560
    %v729 = vtanh.pop %v565
    %v730 = vtanh.pop %v568
    %v731 = vtanh.pop %v573
    %v732 = vtanh.pop %v576
    %v733 = vtanh.pop %v581
    %v734 = vtanh.pop %v584
    %v735 = vtanh.pop %v589
    %v736 = vtanh.pop %v592
    %v737 = vtanh.pop %v597
    %v738 = vtanh.pop %v600
    %v739 = vtanh.pop %v605
    %v740 = vtanh.pop %v608
    %v741 = vtanh.pop %v613
    %v742 = vtanh.pop %v616
    %v743 = vtanh.pop %v621
    %v744 = vtanh.pop %v624
    %v745 = vtanh.pop %v629
    %v746 = vtanh.pop %v632
    %v747 = vtanh.pop %v637
    %v748 = vtanh.pop %v640
    %v749 = vtanh.pop %v645
    %v750 = vtanh.pop %v648
    %v751 = vtanh.pop %v653
    %v752 = vtanh.pop %v656
    %v753 = vtanh.pop %v661
    %v754 = vtanh.pop %v664
    %v755 = vtanh.pop %v669
    %v756 = vtanh.pop %v672
    %v757 = vtanh.pop %v677
    %v758 = vtanh.pop %v680
    %v759 = vtanh.pop %v685
    %v760 = vtanh.pop %v688
    %v761 = vtanh.pop %v693
    %v762 = vtanh.pop %v696
    %v763 = vpack.c.bf16 %v700, %v699
    %v764 = vpack.c.bf16 %v702, %v701
    %v765 = vpack.c.bf16 %v704, %v703
    %v766 = vpack.c.bf16 %v706, %v705
    %v767 = vpack.c.bf16 %v708, %v707
    %v768 = vpack.c.bf16 %v710, %v709
    %v769 = vpack.c.bf16 %v712, %v711
    %v770 = vpack.c.bf16 %v714, %v713
    %v771 = vpack.c.bf16 %v716, %v715
    %v772 = vpack.c.bf16 %v718, %v717
    %v773 = vpack.c.bf16 %v720, %v719
    %v774 = vpack.c.bf16 %v722, %v721
    %v775 = vpack.c.bf16 %v724, %v723
    %v776 = vpack.c.bf16 %v726, %v725
    %v777 = vpack.c.bf16 %v728, %v727
    %v778 = vpack.c.bf16 %v730, %v729
    %v779 = vpack.c.bf16 %v732, %v731
    %v780 = vpack.c.bf16 %v734, %v733
    %v781 = vpack.c.bf16 %v736, %v735
    %v782 = vpack.c.bf16 %v738, %v737
    %v783 = vpack.c.bf16 %v740, %v739
    %v784 = vpack.c.bf16 %v742, %v741
    %v785 = vpack.c.bf16 %v744, %v743
    %v786 = vpack.c.bf16 %v746, %v745
    %v787 = vpack.c.bf16 %v748, %v747
    %v788 = vpack.c.bf16 %v750, %v749
    %v789 = vpack.c.bf16 %v752, %v751
    %v790 = vpack.c.bf16 %v754, %v753
    %v791 = vpack.c.bf16 %v756, %v755
    %v792 = vpack.c.bf16 %v758, %v757
    %v793 = vpack.c.bf16 %v760, %v759
    %v794 = vpack.c.bf16 %v762, %v761
    %v795 = vld [vmem:[#allocation7] sm:$0xf]
    %v796 = vld [vmem:[#allocation7 + $0x4] sm:$0xf]
    %v797 = vld [vmem:[#allocation7 + $0x8] sm:$0xf]
    %v798 = vld [vmem:[#allocation7 + $0xc] sm:$0xf]
    %v799 = vld [vmem:[#allocation7 + $0x10] sm:$0xf]
    %v800 = vld [vmem:[#allocation7 + $0x14] sm:$0xf]
    %v801 = vld [vmem:[#allocation7 + $0x18] sm:$0xf]
    %v802 = vld [vmem:[#allocation7 + $0x1c] sm:$0xf]
    %v803 = vld [vmem:[#allocation7 + $0x20] sm:$0xf]
    %v804 = vld [vmem:[#allocation7 + $0x24] sm:$0xf]
    %v805 = vld [vmem:[#allocation7 + $0x28] sm:$0xf]
    %v806 = vld [vmem:[#allocation7 + $0x2c] sm:$0xf]
    %v807 = vld [vmem:[#allocation7 + $0x30] sm:$0xf]
    %v808 = vld [vmem:[#allocation7 + $0x34] sm:$0xf]
    %v809 = vld [vmem:[#allocation7 + $0x38] sm:$0xf]
    %v810 = vld [vmem:[#allocation7 + $0x3c] sm:$0xf]
    %v811 = vld [vmem:[%s4] sm:$0x1]
    %v813 = vlaneseq
    %v814 = vshrl.u32 %v813, 7
    %v815 = vsub.s32 0, %v814
    %v816 = vrot.slane %v811, %v815
    %v834 = vunpack.c.l.b16 %v795
    %v835 = vunpack.c.l.b16 %v796
    %v836 = vunpack.c.l.b16 %v797
    %v837 = vunpack.c.l.b16 %v798
    %v838 = vunpack.c.l.b16 %v799
    %v839 = vunpack.c.l.b16 %v800
    %v840 = vunpack.c.l.b16 %v801
    %v841 = vunpack.c.l.b16 %v802
    %v842 = vunpack.c.l.b16 %v803
    %v843 = vunpack.c.l.b16 %v804
    %v844 = vunpack.c.l.b16 %v805
    %v845 = vunpack.c.l.b16 %v806
    %v846 = vunpack.c.l.b16 %v807
    %v847 = vunpack.c.l.b16 %v808
    %v848 = vunpack.c.l.b16 %v809
    %v849 = vunpack.c.l.b16 %v810
    %v850 = vpack.c.b16 %v835, %v834
    %v851 = vpack.c.b16 %v837, %v836
    %v852 = vpack.c.b16 %v839, %v838
    %v853 = vpack.c.b16 %v841, %v840
    %v854 = vpack.c.b16 %v843, %v842
    %v855 = vpack.c.b16 %v845, %v844
    %v856 = vpack.c.b16 %v847, %v846
    %v857 = vpack.c.b16 %v849, %v848
    %866 = vmatprep.subr.bf16.mxu0 0
    %867 = vmatpush1.bf16.msra.mxu0 %v857
    %868 = vmatprep.subr.bf16.mxu0 0
    %869 = vmatpush1.bf16.msra.mxu0 %v856
    %870 = vmatprep.subr.bf16.mxu0 0
    %871 = vmatpush1.bf16.msra.mxu0 %v855
    %872 = vmatprep.subr.bf16.mxu0 0
    %873 = vmatpush1.bf16.msra.mxu0 %v854
    %874 = vmatprep.subr.bf16.mxu0 0
    %875 = vmatpush1.bf16.msra.mxu0 %v853
    %876 = vmatprep.subr.bf16.mxu0 0
    %877 = vmatpush1.bf16.msra.mxu0 %v852
    %878 = vmatprep.subr.bf16.mxu0 0
    %879 = vmatpush1.bf16.msra.mxu0 %v851
    %880 = vmatprep.subr.bf16.mxu0 0
    %881 = vmatpush1.bf16.msra.mxu0 %v850
    %882 = vmatprep.subr.bf16.mxu0 0
    %883 = vmatpush2.bf16.msra.mxu0 0
    %884 = vmatprep.subr.bf16.mxu0 0
    %885 = vmatpush2.bf16.msra.mxu0 0
    %886 = vmatprep.subr.bf16.mxu0 0
    %887 = vmatpush2.bf16.msra.mxu0 0
    %888 = vmatprep.subr.bf16.mxu0 0
    %889 = vmatpush2.bf16.msra.mxu0 0
    %890 = vmatprep.subr.bf16.mxu0 0
    %891 = vmatpush2.bf16.msra.mxu0 0
    %892 = vmatprep.subr.bf16.mxu0 0
    %893 = vmatpush2.bf16.msra.mxu0 0
    %894 = vmatprep.subr.bf16.mxu0 0
    %895 = vmatpush2.bf16.msra.mxu0 0
    %896 = vmatprep.subr.bf16.mxu0 0
    %897 = vmatpush2.bf16.msra.mxu0 0
    %898 = vmatprep.mubr.bf16.mxu0 0
    %899 = vmatmul.mubr.bf16.gmra.mxu0 %v763
    %v900 = vpop.f32.mrf.mxu0
    %v901 = vadd.f32 %v816, %v900
    %v902 = vpop.f32.mrf.mxu0
    %v903 = vpop.f32.mrf.mxu0
    %v904 = vadd.f32 %v816, %v903
    %v905 = vpop.f32.mrf.mxu0
    %906 = vmatprep.mubr.bf16.mxu0 0
    %907 = vmatmul.mubr.bf16.gmra.mxu0 %v764
    %v908 = vpop.f32.mrf.mxu0
    %v909 = vadd.f32 %v816, %v908
    %v910 = vpop.f32.mrf.mxu0
    %v911 = vpop.f32.mrf.mxu0
    %v912 = vadd.f32 %v816, %v911
    %v913 = vpop.f32.mrf.mxu0
    %914 = vmatprep.mubr.bf16.mxu0 0
    %915 = vmatmul.mubr.bf16.gmra.mxu0 %v765
    %v916 = vpop.f32.mrf.mxu0
    %v917 = vadd.f32 %v816, %v916
    %v918 = vpop.f32.mrf.mxu0
    %v919 = vpop.f32.mrf.mxu0
    %v920 = vadd.f32 %v816, %v919
    %v921 = vpop.f32.mrf.mxu0
    %922 = vmatprep.mubr.bf16.mxu0 0
    %923 = vmatmul.mubr.bf16.gmra.mxu0 %v766
    %v924 = vpop.f32.mrf.mxu0
    %v925 = vadd.f32 %v816, %v924
    %v926 = vpop.f32.mrf.mxu0
    %v927 = vpop.f32.mrf.mxu0
    %v928 = vadd.f32 %v816, %v927
    %v929 = vpop.f32.mrf.mxu0
    %930 = vmatprep.mubr.bf16.mxu0 0
    %931 = vmatmul.mubr.bf16.gmra.mxu0 %v767
    %v932 = vpop.f32.mrf.mxu0
    %v933 = vadd.f32 %v816, %v932
    %v934 = vpop.f32.mrf.mxu0
    %v935 = vpop.f32.mrf.mxu0
    %v936 = vadd.f32 %v816, %v935
    %v937 = vpop.f32.mrf.mxu0
    %938 = vmatprep.mubr.bf16.mxu0 0
    %939 = vmatmul.mubr.bf16.gmra.mxu0 %v768
    %v940 = vpop.f32.mrf.mxu0
    %v941 = vadd.f32 %v816, %v940
    %v942 = vpop.f32.mrf.mxu0
    %v943 = vpop.f32.mrf.mxu0
    %v944 = vadd.f32 %v816, %v943
    %v945 = vpop.f32.mrf.mxu0
    %946 = vmatprep.mubr.bf16.mxu0 0
    %947 = vmatmul.mubr.bf16.gmra.mxu0 %v769
    %v948 = vpop.f32.mrf.mxu0
    %v949 = vadd.f32 %v816, %v948
    %v950 = vpop.f32.mrf.mxu0
    %v951 = vpop.f32.mrf.mxu0
    %v952 = vadd.f32 %v816, %v951
    %v953 = vpop.f32.mrf.mxu0
    %954 = vmatprep.mubr.bf16.mxu0 0
    %955 = vmatmul.mubr.bf16.gmra.mxu0 %v770
    %v956 = vpop.f32.mrf.mxu0
    %v957 = vadd.f32 %v816, %v956
    %v958 = vpop.f32.mrf.mxu0
    %v959 = vpop.f32.mrf.mxu0
    %v960 = vadd.f32 %v816, %v959
    %v961 = vpop.f32.mrf.mxu0
    %962 = vmatprep.mubr.bf16.mxu0 0
    %963 = vmatmul.mubr.bf16.gmra.mxu0 %v771
    %v964 = vpop.f32.mrf.mxu0
    %v965 = vadd.f32 %v816, %v964
    %v966 = vpop.f32.mrf.mxu0
    %v967 = vpop.f32.mrf.mxu0
    %v968 = vadd.f32 %v816, %v967
    %v969 = vpop.f32.mrf.mxu0
    %970 = vmatprep.mubr.bf16.mxu0 0
    %971 = vmatmul.mubr.bf16.gmra.mxu0 %v772
    %v972 = vpop.f32.mrf.mxu0
    %v973 = vadd.f32 %v816, %v972
    %v974 = vpop.f32.mrf.mxu0
    %v975 = vpop.f32.mrf.mxu0
    %v976 = vadd.f32 %v816, %v975
    %v977 = vpop.f32.mrf.mxu0
    %978 = vmatprep.mubr.bf16.mxu0 0
    %979 = vmatmul.mubr.bf16.gmra.mxu0 %v773
    %v980 = vpop.f32.mrf.mxu0
    %v981 = vadd.f32 %v816, %v980
    %v982 = vpop.f32.mrf.mxu0
    %v983 = vpop.f32.mrf.mxu0
    %v984 = vadd.f32 %v816, %v983
    %v985 = vpop.f32.mrf.mxu0
    %986 = vmatprep.mubr.bf16.mxu0 0
    %987 = vmatmul.mubr.bf16.gmra.mxu0 %v774
    %v988 = vpop.f32.mrf.mxu0
    %v989 = vadd.f32 %v816, %v988
    %v990 = vpop.f32.mrf.mxu0
    %v991 = vpop.f32.mrf.mxu0
    %v992 = vadd.f32 %v816, %v991
    %v993 = vpop.f32.mrf.mxu0
    %994 = vmatprep.mubr.bf16.mxu0 0
    %995 = vmatmul.mubr.bf16.gmra.mxu0 %v775
    %v996 = vpop.f32.mrf.mxu0
    %v997 = vadd.f32 %v816, %v996
    %v998 = vpop.f32.mrf.mxu0
    %v999 = vpop.f32.mrf.mxu0
    %v1000 = vadd.f32 %v816, %v999
    %v1001 = vpop.f32.mrf.mxu0
    %1002 = vmatprep.mubr.bf16.mxu0 0
    %1003 = vmatmul.mubr.bf16.gmra.mxu0 %v776
    %v1004 = vpop.f32.mrf.mxu0
    %v1005 = vadd.f32 %v816, %v1004
    %v1006 = vpop.f32.mrf.mxu0
    %v1007 = vpop.f32.mrf.mxu0
    %v1008 = vadd.f32 %v816, %v1007
    %v1009 = vpop.f32.mrf.mxu0
    %1010 = vmatprep.mubr.bf16.mxu0 0
    %1011 = vmatmul.mubr.bf16.gmra.mxu0 %v777
    %v1012 = vpop.f32.mrf.mxu0
    %v1013 = vadd.f32 %v816, %v1012
    %v1014 = vpop.f32.mrf.mxu0
    %v1015 = vpop.f32.mrf.mxu0
    %v1016 = vadd.f32 %v816, %v1015
    %v1017 = vpop.f32.mrf.mxu0
    %1018 = vmatprep.mubr.bf16.mxu0 0
    %1019 = vmatmul.mubr.bf16.gmra.mxu0 %v778
    %v1020 = vpop.f32.mrf.mxu0
    %v1021 = vadd.f32 %v816, %v1020
    %v1022 = vpop.f32.mrf.mxu0
    %v1023 = vpop.f32.mrf.mxu0
    %v1024 = vadd.f32 %v816, %v1023
    %v1025 = vpop.f32.mrf.mxu0
    %1026 = vmatprep.mubr.bf16.mxu0 0
    %1027 = vmatmul.mubr.bf16.gmra.mxu0 %v779
    %v1028 = vpop.f32.mrf.mxu0
    %v1029 = vadd.f32 %v816, %v1028
    %v1030 = vpop.f32.mrf.mxu0
    %v1031 = vpop.f32.mrf.mxu0
    %v1032 = vadd.f32 %v816, %v1031
    %v1033 = vpop.f32.mrf.mxu0
    %1034 = vmatprep.mubr.bf16.mxu0 0
    %1035 = vmatmul.mubr.bf16.gmra.mxu0 %v780
    %v1036 = vpop.f32.mrf.mxu0
    %v1037 = vadd.f32 %v816, %v1036
    %v1038 = vpop.f32.mrf.mxu0
    %v1039 = vpop.f32.mrf.mxu0
    %v1040 = vadd.f32 %v816, %v1039
    %v1041 = vpop.f32.mrf.mxu0
    %1042 = vmatprep.mubr.bf16.mxu0 0
    %1043 = vmatmul.mubr.bf16.gmra.mxu0 %v781
    %v1044 = vpop.f32.mrf.mxu0
    %v1045 = vadd.f32 %v816, %v1044
    %v1046 = vpop.f32.mrf.mxu0
    %v1047 = vpop.f32.mrf.mxu0
    %v1048 = vadd.f32 %v816, %v1047
    %v1049 = vpop.f32.mrf.mxu0
    %1050 = vmatprep.mubr.bf16.mxu0 0
    %1051 = vmatmul.mubr.bf16.gmra.mxu0 %v782
    %v1052 = vpop.f32.mrf.mxu0
    %v1053 = vadd.f32 %v816, %v1052
    %v1054 = vpop.f32.mrf.mxu0
    %v1055 = vpop.f32.mrf.mxu0
    %v1056 = vadd.f32 %v816, %v1055
    %v1057 = vpop.f32.mrf.mxu0
    %1058 = vmatprep.mubr.bf16.mxu0 0
    %1059 = vmatmul.mubr.bf16.gmra.mxu0 %v783
    %v1060 = vpop.f32.mrf.mxu0
    %v1061 = vadd.f32 %v816, %v1060
    %v1062 = vpop.f32.mrf.mxu0
    %v1063 = vpop.f32.mrf.mxu0
    %v1064 = vadd.f32 %v816, %v1063
    %v1065 = vpop.f32.mrf.mxu0
    %1066 = vmatprep.mubr.bf16.mxu0 0
    %1067 = vmatmul.mubr.bf16.gmra.mxu0 %v784
    %v1068 = vpop.f32.mrf.mxu0
    %v1069 = vadd.f32 %v816, %v1068
    %v1070 = vpop.f32.mrf.mxu0
    %v1071 = vpop.f32.mrf.mxu0
    %v1072 = vadd.f32 %v816, %v1071
    %v1073 = vpop.f32.mrf.mxu0
    %1074 = vmatprep.mubr.bf16.mxu0 0
    %1075 = vmatmul.mubr.bf16.gmra.mxu0 %v785
    %v1076 = vpop.f32.mrf.mxu0
    %v1077 = vadd.f32 %v816, %v1076
    %v1078 = vpop.f32.mrf.mxu0
    %v1079 = vpop.f32.mrf.mxu0
    %v1080 = vadd.f32 %v816, %v1079
    %v1081 = vpop.f32.mrf.mxu0
    %1082 = vmatprep.mubr.bf16.mxu0 0
    %1083 = vmatmul.mubr.bf16.gmra.mxu0 %v786
    %v1084 = vpop.f32.mrf.mxu0
    %v1085 = vadd.f32 %v816, %v1084
    %v1086 = vpop.f32.mrf.mxu0
    %v1087 = vpop.f32.mrf.mxu0
    %v1088 = vadd.f32 %v816, %v1087
    %v1089 = vpop.f32.mrf.mxu0
    %1090 = vmatprep.mubr.bf16.mxu0 0
    %1091 = vmatmul.mubr.bf16.gmra.mxu0 %v787
    %v1092 = vpop.f32.mrf.mxu0
    %v1093 = vadd.f32 %v816, %v1092
    %v1094 = vpop.f32.mrf.mxu0
    %v1095 = vpop.f32.mrf.mxu0
    %v1096 = vadd.f32 %v816, %v1095
    %v1097 = vpop.f32.mrf.mxu0
    %1098 = vmatprep.mubr.bf16.mxu0 0
    %1099 = vmatmul.mubr.bf16.gmra.mxu0 %v788
    %v1100 = vpop.f32.mrf.mxu0
    %v1101 = vadd.f32 %v816, %v1100
    %v1102 = vpop.f32.mrf.mxu0
    %v1103 = vpop.f32.mrf.mxu0
    %v1104 = vadd.f32 %v816, %v1103
    %v1105 = vpop.f32.mrf.mxu0
    %1106 = vmatprep.mubr.bf16.mxu0 0
    %1107 = vmatmul.mubr.bf16.gmra.mxu0 %v789
    %v1108 = vpop.f32.mrf.mxu0
    %v1109 = vadd.f32 %v816, %v1108
    %v1110 = vpop.f32.mrf.mxu0
    %v1111 = vpop.f32.mrf.mxu0
    %v1112 = vadd.f32 %v816, %v1111
    %v1113 = vpop.f32.mrf.mxu0
    %1114 = vmatprep.mubr.bf16.mxu0 0
    %1115 = vmatmul.mubr.bf16.gmra.mxu0 %v790
    %v1116 = vpop.f32.mrf.mxu0
    %v1117 = vadd.f32 %v816, %v1116
    %v1118 = vpop.f32.mrf.mxu0
    %v1119 = vpop.f32.mrf.mxu0
    %v1120 = vadd.f32 %v816, %v1119
    %v1121 = vpop.f32.mrf.mxu0
    %1122 = vmatprep.mubr.bf16.mxu0 0
    %1123 = vmatmul.mubr.bf16.gmra.mxu0 %v791
    %v1124 = vpop.f32.mrf.mxu0
    %v1125 = vadd.f32 %v816, %v1124
    %v1126 = vpop.f32.mrf.mxu0
    %v1127 = vpop.f32.mrf.mxu0
    %v1128 = vadd.f32 %v816, %v1127
    %v1129 = vpop.f32.mrf.mxu0
    %1130 = vmatprep.mubr.bf16.mxu0 0
    %1131 = vmatmul.mubr.bf16.gmra.mxu0 %v792
    %v1132 = vpop.f32.mrf.mxu0
    %v1133 = vadd.f32 %v816, %v1132
    %v1134 = vpop.f32.mrf.mxu0
    %v1135 = vpop.f32.mrf.mxu0
    %v1136 = vadd.f32 %v816, %v1135
    %v1137 = vpop.f32.mrf.mxu0
    %1138 = vmatprep.mubr.bf16.mxu0 0
    %1139 = vmatmul.mubr.bf16.gmra.mxu0 %v793
    %v1140 = vpop.f32.mrf.mxu0
    %v1141 = vadd.f32 %v816, %v1140
    %v1142 = vpop.f32.mrf.mxu0
    %v1143 = vpop.f32.mrf.mxu0
    %v1144 = vadd.f32 %v816, %v1143
    %v1145 = vpop.f32.mrf.mxu0
    %1146 = vmatprep.mubr.bf16.mxu0 0
    %1147 = vmatmul.mubr.bf16.gmra.mxu0 %v794
    %v1148 = vpop.f32.mrf.mxu0
    %v1149 = vadd.f32 %v816, %v1148
    %v1150 = vpop.f32.mrf.mxu0
    %v1151 = vpop.f32.mrf.mxu0
    %v1152 = vadd.f32 %v816, %v1151
    %v1153 = vpop.f32.mrf.mxu0
    %1154 = vdwg.mxu0
    %v1155 = vmax.f32 %v901, 0.0
    %v1156 = vmax.f32 %v904, 0.0
    %v1157 = vmax.f32 %v909, 0.0
    %v1158 = vmax.f32 %v912, 0.0
    %v1159 = vmax.f32 %v917, 0.0
    %v1160 = vmax.f32 %v920, 0.0
    %v1161 = vmax.f32 %v925, 0.0
    %v1162 = vmax.f32 %v928, 0.0
    %v1163 = vmax.f32 %v933, 0.0
    %v1164 = vmax.f32 %v936, 0.0
    %v1165 = vmax.f32 %v941, 0.0
    %v1166 = vmax.f32 %v944, 0.0
    %v1167 = vmax.f32 %v949, 0.0
    %v1168 = vmax.f32 %v952, 0.0
    %v1169 = vmax.f32 %v957, 0.0
    %v1170 = vmax.f32 %v960, 0.0
    %v1171 = vmax.f32 %v965, 0.0
    %v1172 = vmax.f32 %v968, 0.0
    %v1173 = vmax.f32 %v973, 0.0
    %v1174 = vmax.f32 %v976, 0.0
    %v1175 = vmax.f32 %v981, 0.0
    %v1176 = vmax.f32 %v984, 0.0
    %v1177 = vmax.f32 %v989, 0.0
    %v1178 = vmax.f32 %v992, 0.0
    %v1179 = vmax.f32 %v997, 0.0
    %v1180 = vmax.f32 %v1000, 0.0
    %v1181 = vmax.f32 %v1005, 0.0
    %v1182 = vmax.f32 %v1008, 0.0
    %v1183 = vmax.f32 %v1013, 0.0
    %v1184 = vmax.f32 %v1016, 0.0
    %v1185 = vmax.f32 %v1021, 0.0
    %v1186 = vmax.f32 %v1024, 0.0
    %v1187 = vmax.f32 %v1029, 0.0
    %v1188 = vmax.f32 %v1032, 0.0
    %v1189 = vmax.f32 %v1037, 0.0
    %v1190 = vmax.f32 %v1040, 0.0
    %v1191 = vmax.f32 %v1045, 0.0
    %v1192 = vmax.f32 %v1048, 0.0
    %v1193 = vmax.f32 %v1053, 0.0
    %v1194 = vmax.f32 %v1056, 0.0
    %v1195 = vmax.f32 %v1061, 0.0
    %v1196 = vmax.f32 %v1064, 0.0
    %v1197 = vmax.f32 %v1069, 0.0
    %v1198 = vmax.f32 %v1072, 0.0
    %v1199 = vmax.f32 %v1077, 0.0
    %v1200 = vmax.f32 %v1080, 0.0
    %v1201 = vmax.f32 %v1085, 0.0
    %v1202 = vmax.f32 %v1088, 0.0
    %v1203 = vmax.f32 %v1093, 0.0
    %v1204 = vmax.f32 %v1096, 0.0
    %v1205 = vmax.f32 %v1101, 0.0
    %v1206 = vmax.f32 %v1104, 0.0
    %v1207 = vmax.f32 %v1109, 0.0
    %v1208 = vmax.f32 %v1112, 0.0
    %v1209 = vmax.f32 %v1117, 0.0
    %v1210 = vmax.f32 %v1120, 0.0
    %v1211 = vmax.f32 %v1125, 0.0
    %v1212 = vmax.f32 %v1128, 0.0
    %v1213 = vmax.f32 %v1133, 0.0
    %v1214 = vmax.f32 %v1136, 0.0
    %v1215 = vmax.f32 %v1141, 0.0
    %v1216 = vmax.f32 %v1144, 0.0
    %v1217 = vmax.f32 %v1149, 0.0
    %v1218 = vmax.f32 %v1152, 0.0
    %v1219 = vpack.c.bf16 %v1156, %v1155
    %v1220 = vpack.c.bf16 %v1158, %v1157
    %v1221 = vpack.c.bf16 %v1160, %v1159
    %v1222 = vpack.c.bf16 %v1162, %v1161
    %v1223 = vpack.c.bf16 %v1164, %v1163
    %v1224 = vpack.c.bf16 %v1166, %v1165
    %v1225 = vpack.c.bf16 %v1168, %v1167
    %v1226 = vpack.c.bf16 %v1170, %v1169
    %v1227 = vpack.c.bf16 %v1172, %v1171
    %v1228 = vpack.c.bf16 %v1174, %v1173
    %v1229 = vpack.c.bf16 %v1176, %v1175
    %v1230 = vpack.c.bf16 %v1178, %v1177
    %v1231 = vpack.c.bf16 %v1180, %v1179
    %v1232 = vpack.c.bf16 %v1182, %v1181
    %v1233 = vpack.c.bf16 %v1184, %v1183
    %v1234 = vpack.c.bf16 %v1186, %v1185
    %v1235 = vpack.c.bf16 %v1188, %v1187
    %v1236 = vpack.c.bf16 %v1190, %v1189
    %v1237 = vpack.c.bf16 %v1192, %v1191
    %v1238 = vpack.c.bf16 %v1194, %v1193
    %v1239 = vpack.c.bf16 %v1196, %v1195
    %v1240 = vpack.c.bf16 %v1198, %v1197
    %v1241 = vpack.c.bf16 %v1200, %v1199
    %v1242 = vpack.c.bf16 %v1202, %v1201
    %v1243 = vpack.c.bf16 %v1204, %v1203
    %v1244 = vpack.c.bf16 %v1206, %v1205
    %v1245 = vpack.c.bf16 %v1208, %v1207
    %v1246 = vpack.c.bf16 %v1210, %v1209
    %v1247 = vpack.c.bf16 %v1212, %v1211
    %v1248 = vpack.c.bf16 %v1214, %v1213
    %v1249 = vpack.c.bf16 %v1216, %v1215
    %v1250 = vpack.c.bf16 %v1218, %v1217
    %v1251 = vld [vmem:[#allocation8] sm:$0xf]
    %v1252 = vld [vmem:[#allocation8 + $0x4] sm:$0xf]
    %v1253 = vld [vmem:[#allocation8 + $0x8] sm:$0xf]
    %v1254 = vld [vmem:[#allocation8 + $0xc] sm:$0xf]
    %v1255 = vld [vmem:[#allocation8 + $0x10] sm:$0xf]
    %v1256 = vld [vmem:[#allocation8 + $0x14] sm:$0xf]
    %v1257 = vld [vmem:[#allocation8 + $0x18] sm:$0xf]
    %v1258 = vld [vmem:[#allocation8 + $0x1c] sm:$0xf]
    %v1259 = vld [vmem:[#allocation8 + $0x20] sm:$0xf]
    %v1260 = vld [vmem:[#allocation8 + $0x24] sm:$0xf]
    %v1261 = vld [vmem:[#allocation8 + $0x28] sm:$0xf]
    %v1262 = vld [vmem:[#allocation8 + $0x2c] sm:$0xf]
    %v1263 = vld [vmem:[#allocation8 + $0x30] sm:$0xf]
    %v1264 = vld [vmem:[#allocation8 + $0x34] sm:$0xf]
    %v1265 = vld [vmem:[#allocation8 + $0x38] sm:$0xf]
    %v1266 = vld [vmem:[#allocation8 + $0x3c] sm:$0xf]
    %v1267 = vld [vmem:[%s6] sm:$0x1]
    %v1269 = vlaneseq
    %v1270 = vshrl.u32 %v1269, 7
    %v1271 = vsub.s32 0, %v1270
    %v1272 = vrot.slane %v1267, %v1271
    %v1290 = vunpack.c.l.b16 %v1251
    %v1291 = vunpack.c.l.b16 %v1252
    %v1292 = vunpack.c.l.b16 %v1253
    %v1293 = vunpack.c.l.b16 %v1254
    %v1294 = vunpack.c.l.b16 %v1255
    %v1295 = vunpack.c.l.b16 %v1256
    %v1296 = vunpack.c.l.b16 %v1257
    %v1297 = vunpack.c.l.b16 %v1258
    %v1298 = vunpack.c.l.b16 %v1259
    %v1299 = vunpack.c.l.b16 %v1260
    %v1300 = vunpack.c.l.b16 %v1261
    %v1301 = vunpack.c.l.b16 %v1262
    %v1302 = vunpack.c.l.b16 %v1263
    %v1303 = vunpack.c.l.b16 %v1264
    %v1304 = vunpack.c.l.b16 %v1265
    %v1305 = vunpack.c.l.b16 %v1266
    %v1306 = vpack.c.b16 %v1291, %v1290
    %v1307 = vpack.c.b16 %v1293, %v1292
    %v1308 = vpack.c.b16 %v1295, %v1294
    %v1309 = vpack.c.b16 %v1297, %v1296
    %v1310 = vpack.c.b16 %v1299, %v1298
    %v1311 = vpack.c.b16 %v1301, %v1300
    %v1312 = vpack.c.b16 %v1303, %v1302
    %v1313 = vpack.c.b16 %v1305, %v1304
    %1322 = vmatprep.subr.bf16.mxu0 0
    %1323 = vmatpush1.bf16.msra.mxu0 %v1313
    %1324 = vmatprep.subr.bf16.mxu0 0
    %1325 = vmatpush1.bf16.msra.mxu0 %v1312
    %1326 = vmatprep.subr.bf16.mxu0 0
    %1327 = vmatpush1.bf16.msra.mxu0 %v1311
    %1328 = vmatprep.subr.bf16.mxu0 0
    %1329 = vmatpush1.bf16.msra.mxu0 %v1310
    %1330 = vmatprep.subr.bf16.mxu0 0
    %1331 = vmatpush1.bf16.msra.mxu0 %v1309
    %1332 = vmatprep.subr.bf16.mxu0 0
    %1333 = vmatpush1.bf16.msra.mxu0 %v1308
    %1334 = vmatprep.subr.bf16.mxu0 0
    %1335 = vmatpush1.bf16.msra.mxu0 %v1307
    %1336 = vmatprep.subr.bf16.mxu0 0
    %1337 = vmatpush1.bf16.msra.mxu0 %v1306
    %1338 = vmatprep.subr.bf16.mxu0 0
    %1339 = vmatpush2.bf16.msra.mxu0 0
    %1340 = vmatprep.subr.bf16.mxu0 0
    %1341 = vmatpush2.bf16.msra.mxu0 0
    %1342 = vmatprep.subr.bf16.mxu0 0
    %1343 = vmatpush2.bf16.msra.mxu0 0
    %1344 = vmatprep.subr.bf16.mxu0 0
    %1345 = vmatpush2.bf16.msra.mxu0 0
    %1346 = vmatprep.subr.bf16.mxu0 0
    %1347 = vmatpush2.bf16.msra.mxu0 0
    %1348 = vmatprep.subr.bf16.mxu0 0
    %1349 = vmatpush2.bf16.msra.mxu0 0
    %1350 = vmatprep.subr.bf16.mxu0 0
    %1351 = vmatpush2.bf16.msra.mxu0 0
    %1352 = vmatprep.subr.bf16.mxu0 0
    %1353 = vmatpush2.bf16.msra.mxu0 0
    %1354 = vmatprep.mubr.bf16.mxu0 0
    %1355 = vmatmul.mubr.bf16.gmra.mxu0 %v1219
    %v1356 = vpop.f32.mrf.mxu0
    %v1357 = vadd.f32 %v1272, %v1356
    %v1358 = vpop.f32.mrf.mxu0
    %v1359 = vpop.f32.mrf.mxu0
    %v1360 = vadd.f32 %v1272, %v1359
    %v1361 = vpop.f32.mrf.mxu0
    %1362 = vmatprep.mubr.bf16.mxu0 0
    %1363 = vmatmul.mubr.bf16.gmra.mxu0 %v1220
    %v1364 = vpop.f32.mrf.mxu0
    %v1365 = vadd.f32 %v1272, %v1364
    %v1366 = vpop.f32.mrf.mxu0
    %v1367 = vpop.f32.mrf.mxu0
    %v1368 = vadd.f32 %v1272, %v1367
    %v1369 = vpop.f32.mrf.mxu0
    %1370 = vmatprep.mubr.bf16.mxu0 0
    %1371 = vmatmul.mubr.bf16.gmra.mxu0 %v1221
    %v1372 = vpop.f32.mrf.mxu0
    %v1373 = vadd.f32 %v1272, %v1372
    %v1374 = vpop.f32.mrf.mxu0
    %v1375 = vpop.f32.mrf.mxu0
    %v1376 = vadd.f32 %v1272, %v1375
    %v1377 = vpop.f32.mrf.mxu0
    %1378 = vmatprep.mubr.bf16.mxu0 0
    %1379 = vmatmul.mubr.bf16.gmra.mxu0 %v1222
    %v1380 = vpop.f32.mrf.mxu0
    %v1381 = vadd.f32 %v1272, %v1380
    %v1382 = vpop.f32.mrf.mxu0
    %v1383 = vpop.f32.mrf.mxu0
    %v1384 = vadd.f32 %v1272, %v1383
    %v1385 = vpop.f32.mrf.mxu0
    %1386 = vmatprep.mubr.bf16.mxu0 0
    %1387 = vmatmul.mubr.bf16.gmra.mxu0 %v1223
    %v1388 = vpop.f32.mrf.mxu0
    %v1389 = vadd.f32 %v1272, %v1388
    %v1390 = vpop.f32.mrf.mxu0
    %v1391 = vpop.f32.mrf.mxu0
    %v1392 = vadd.f32 %v1272, %v1391
    %v1393 = vpop.f32.mrf.mxu0
    %1394 = vmatprep.mubr.bf16.mxu0 0
    %1395 = vmatmul.mubr.bf16.gmra.mxu0 %v1224
    %v1396 = vpop.f32.mrf.mxu0
    %v1397 = vadd.f32 %v1272, %v1396
    %v1398 = vpop.f32.mrf.mxu0
    %v1399 = vpop.f32.mrf.mxu0
    %v1400 = vadd.f32 %v1272, %v1399
    %v1401 = vpop.f32.mrf.mxu0
    %1402 = vmatprep.mubr.bf16.mxu0 0
    %1403 = vmatmul.mubr.bf16.gmra.mxu0 %v1225
    %v1404 = vpop.f32.mrf.mxu0
    %v1405 = vadd.f32 %v1272, %v1404
    %v1406 = vpop.f32.mrf.mxu0
    %v1407 = vpop.f32.mrf.mxu0
    %v1408 = vadd.f32 %v1272, %v1407
    %v1409 = vpop.f32.mrf.mxu0
    %1410 = vmatprep.mubr.bf16.mxu0 0
    %1411 = vmatmul.mubr.bf16.gmra.mxu0 %v1226
    %v1412 = vpop.f32.mrf.mxu0
    %v1413 = vadd.f32 %v1272, %v1412
    %v1414 = vpop.f32.mrf.mxu0
    %v1415 = vpop.f32.mrf.mxu0
    %v1416 = vadd.f32 %v1272, %v1415
    %v1417 = vpop.f32.mrf.mxu0
    %1418 = vmatprep.mubr.bf16.mxu0 0
    %1419 = vmatmul.mubr.bf16.gmra.mxu0 %v1227
    %v1420 = vpop.f32.mrf.mxu0
    %v1421 = vadd.f32 %v1272, %v1420
    %v1422 = vpop.f32.mrf.mxu0
    %v1423 = vpop.f32.mrf.mxu0
    %v1424 = vadd.f32 %v1272, %v1423
    %v1425 = vpop.f32.mrf.mxu0
    %1426 = vmatprep.mubr.bf16.mxu0 0
    %1427 = vmatmul.mubr.bf16.gmra.mxu0 %v1228
    %v1428 = vpop.f32.mrf.mxu0
    %v1429 = vadd.f32 %v1272, %v1428
    %v1430 = vpop.f32.mrf.mxu0
    %v1431 = vpop.f32.mrf.mxu0
    %v1432 = vadd.f32 %v1272, %v1431
    %v1433 = vpop.f32.mrf.mxu0
    %1434 = vmatprep.mubr.bf16.mxu0 0
    %1435 = vmatmul.mubr.bf16.gmra.mxu0 %v1229
    %v1436 = vpop.f32.mrf.mxu0
    %v1437 = vadd.f32 %v1272, %v1436
    %v1438 = vpop.f32.mrf.mxu0
    %v1439 = vpop.f32.mrf.mxu0
    %v1440 = vadd.f32 %v1272, %v1439
    %v1441 = vpop.f32.mrf.mxu0
    %1442 = vmatprep.mubr.bf16.mxu0 0
    %1443 = vmatmul.mubr.bf16.gmra.mxu0 %v1230
    %v1444 = vpop.f32.mrf.mxu0
    %v1445 = vadd.f32 %v1272, %v1444
    %v1446 = vpop.f32.mrf.mxu0
    %v1447 = vpop.f32.mrf.mxu0
    %v1448 = vadd.f32 %v1272, %v1447
    %v1449 = vpop.f32.mrf.mxu0
    %1450 = vmatprep.mubr.bf16.mxu0 0
    %1451 = vmatmul.mubr.bf16.gmra.mxu0 %v1231
    %v1452 = vpop.f32.mrf.mxu0
    %v1453 = vadd.f32 %v1272, %v1452
    %v1454 = vpop.f32.mrf.mxu0
    %v1455 = vpop.f32.mrf.mxu0
    %v1456 = vadd.f32 %v1272, %v1455
    %v1457 = vpop.f32.mrf.mxu0
    %1458 = vmatprep.mubr.bf16.mxu0 0
    %1459 = vmatmul.mubr.bf16.gmra.mxu0 %v1232
    %v1460 = vpop.f32.mrf.mxu0
    %v1461 = vadd.f32 %v1272, %v1460
    %v1462 = vpop.f32.mrf.mxu0
    %v1463 = vpop.f32.mrf.mxu0
    %v1464 = vadd.f32 %v1272, %v1463
    %v1465 = vpop.f32.mrf.mxu0
    %1466 = vmatprep.mubr.bf16.mxu0 0
    %1467 = vmatmul.mubr.bf16.gmra.mxu0 %v1233
    %v1468 = vpop.f32.mrf.mxu0
    %v1469 = vadd.f32 %v1272, %v1468
    %v1470 = vpop.f32.mrf.mxu0
    %v1471 = vpop.f32.mrf.mxu0
    %v1472 = vadd.f32 %v1272, %v1471
    %v1473 = vpop.f32.mrf.mxu0
    %1474 = vmatprep.mubr.bf16.mxu0 0
    %1475 = vmatmul.mubr.bf16.gmra.mxu0 %v1234
    %v1476 = vpop.f32.mrf.mxu0
    %v1477 = vadd.f32 %v1272, %v1476
    %v1478 = vpop.f32.mrf.mxu0
    %v1479 = vpop.f32.mrf.mxu0
    %v1480 = vadd.f32 %v1272, %v1479
    %v1481 = vpop.f32.mrf.mxu0
    %1482 = vmatprep.mubr.bf16.mxu0 0
    %1483 = vmatmul.mubr.bf16.gmra.mxu0 %v1235
    %v1484 = vpop.f32.mrf.mxu0
    %v1485 = vadd.f32 %v1272, %v1484
    %v1486 = vpop.f32.mrf.mxu0
    %v1487 = vpop.f32.mrf.mxu0
    %v1488 = vadd.f32 %v1272, %v1487
    %v1489 = vpop.f32.mrf.mxu0
    %1490 = vmatprep.mubr.bf16.mxu0 0
    %1491 = vmatmul.mubr.bf16.gmra.mxu0 %v1236
    %v1492 = vpop.f32.mrf.mxu0
    %v1493 = vadd.f32 %v1272, %v1492
    %v1494 = vpop.f32.mrf.mxu0
    %v1495 = vpop.f32.mrf.mxu0
    %v1496 = vadd.f32 %v1272, %v1495
    %v1497 = vpop.f32.mrf.mxu0
    %1498 = vmatprep.mubr.bf16.mxu0 0
    %1499 = vmatmul.mubr.bf16.gmra.mxu0 %v1237
    %v1500 = vpop.f32.mrf.mxu0
    %v1501 = vadd.f32 %v1272, %v1500
    %v1502 = vpop.f32.mrf.mxu0
    %v1503 = vpop.f32.mrf.mxu0
    %v1504 = vadd.f32 %v1272, %v1503
    %v1505 = vpop.f32.mrf.mxu0
    %1506 = vmatprep.mubr.bf16.mxu0 0
    %1507 = vmatmul.mubr.bf16.gmra.mxu0 %v1238
    %v1508 = vpop.f32.mrf.mxu0
    %v1509 = vadd.f32 %v1272, %v1508
    %v1510 = vpop.f32.mrf.mxu0
    %v1511 = vpop.f32.mrf.mxu0
    %v1512 = vadd.f32 %v1272, %v1511
    %v1513 = vpop.f32.mrf.mxu0
    %1514 = vmatprep.mubr.bf16.mxu0 0
    %1515 = vmatmul.mubr.bf16.gmra.mxu0 %v1239
    %v1516 = vpop.f32.mrf.mxu0
    %v1517 = vadd.f32 %v1272, %v1516
    %v1518 = vpop.f32.mrf.mxu0
    %v1519 = vpop.f32.mrf.mxu0
    %v1520 = vadd.f32 %v1272, %v1519
    %v1521 = vpop.f32.mrf.mxu0
    %1522 = vmatprep.mubr.bf16.mxu0 0
    %1523 = vmatmul.mubr.bf16.gmra.mxu0 %v1240
    %v1524 = vpop.f32.mrf.mxu0
    %v1525 = vadd.f32 %v1272, %v1524
    %v1526 = vpop.f32.mrf.mxu0
    %v1527 = vpop.f32.mrf.mxu0
    %v1528 = vadd.f32 %v1272, %v1527
    %v1529 = vpop.f32.mrf.mxu0
    %1530 = vmatprep.mubr.bf16.mxu0 0
    %1531 = vmatmul.mubr.bf16.gmra.mxu0 %v1241
    %v1532 = vpop.f32.mrf.mxu0
    %v1533 = vadd.f32 %v1272, %v1532
    %v1534 = vpop.f32.mrf.mxu0
    %v1535 = vpop.f32.mrf.mxu0
    %v1536 = vadd.f32 %v1272, %v1535
    %v1537 = vpop.f32.mrf.mxu0
    %1538 = vmatprep.mubr.bf16.mxu0 0
    %1539 = vmatmul.mubr.bf16.gmra.mxu0 %v1242
    %v1540 = vpop.f32.mrf.mxu0
    %v1541 = vadd.f32 %v1272, %v1540
    %v1542 = vpop.f32.mrf.mxu0
    %v1543 = vpop.f32.mrf.mxu0
    %v1544 = vadd.f32 %v1272, %v1543
    %v1545 = vpop.f32.mrf.mxu0
    %1546 = vmatprep.mubr.bf16.mxu0 0
    %1547 = vmatmul.mubr.bf16.gmra.mxu0 %v1243
    %v1548 = vpop.f32.mrf.mxu0
    %v1549 = vadd.f32 %v1272, %v1548
    %v1550 = vpop.f32.mrf.mxu0
    %v1551 = vpop.f32.mrf.mxu0
    %v1552 = vadd.f32 %v1272, %v1551
    %v1553 = vpop.f32.mrf.mxu0
    %1554 = vmatprep.mubr.bf16.mxu0 0
    %1555 = vmatmul.mubr.bf16.gmra.mxu0 %v1244
    %v1556 = vpop.f32.mrf.mxu0
    %v1557 = vadd.f32 %v1272, %v1556
    %v1558 = vpop.f32.mrf.mxu0
    %v1559 = vpop.f32.mrf.mxu0
    %v1560 = vadd.f32 %v1272, %v1559
    %v1561 = vpop.f32.mrf.mxu0
    %1562 = vmatprep.mubr.bf16.mxu0 0
    %1563 = vmatmul.mubr.bf16.gmra.mxu0 %v1245
    %v1564 = vpop.f32.mrf.mxu0
    %v1565 = vadd.f32 %v1272, %v1564
    %v1566 = vpop.f32.mrf.mxu0
    %v1567 = vpop.f32.mrf.mxu0
    %v1568 = vadd.f32 %v1272, %v1567
    %v1569 = vpop.f32.mrf.mxu0
    %1570 = vmatprep.mubr.bf16.mxu0 0
    %1571 = vmatmul.mubr.bf16.gmra.mxu0 %v1246
    %v1572 = vpop.f32.mrf.mxu0
    %v1573 = vadd.f32 %v1272, %v1572
    %v1574 = vpop.f32.mrf.mxu0
    %v1575 = vpop.f32.mrf.mxu0
    %v1576 = vadd.f32 %v1272, %v1575
    %v1577 = vpop.f32.mrf.mxu0
    %1578 = vmatprep.mubr.bf16.mxu0 0
    %1579 = vmatmul.mubr.bf16.gmra.mxu0 %v1247
    %v1580 = vpop.f32.mrf.mxu0
    %v1581 = vadd.f32 %v1272, %v1580
    %v1582 = vpop.f32.mrf.mxu0
    %v1583 = vpop.f32.mrf.mxu0
    %v1584 = vadd.f32 %v1272, %v1583
    %v1585 = vpop.f32.mrf.mxu0
    %1586 = vmatprep.mubr.bf16.mxu0 0
    %1587 = vmatmul.mubr.bf16.gmra.mxu0 %v1248
    %v1588 = vpop.f32.mrf.mxu0
    %v1589 = vadd.f32 %v1272, %v1588
    %v1590 = vpop.f32.mrf.mxu0
    %v1591 = vpop.f32.mrf.mxu0
    %v1592 = vadd.f32 %v1272, %v1591
    %v1593 = vpop.f32.mrf.mxu0
    %1594 = vmatprep.mubr.bf16.mxu0 0
    %1595 = vmatmul.mubr.bf16.gmra.mxu0 %v1249
    %v1596 = vpop.f32.mrf.mxu0
    %v1597 = vadd.f32 %v1272, %v1596
    %v1598 = vpop.f32.mrf.mxu0
    %v1599 = vpop.f32.mrf.mxu0
    %v1600 = vadd.f32 %v1272, %v1599
    %v1601 = vpop.f32.mrf.mxu0
    %1602 = vmatprep.mubr.bf16.mxu0 0
    %1603 = vmatmul.mubr.bf16.gmra.mxu0 %v1250
    %v1604 = vpop.f32.mrf.mxu0
    %v1605 = vadd.f32 %v1272, %v1604
    %v1606 = vpop.f32.mrf.mxu0
    %v1607 = vpop.f32.mrf.mxu0
    %v1608 = vadd.f32 %v1272, %v1607
    %v1609 = vpop.f32.mrf.mxu0
    %1610 = vdwg.mxu0
    %v1611 = vlaneseq
    %v1612 = vand.u32 %v1611, 127
    %vm1613 = vcmp.lt.s32.totalorder %v1612, 16
    %v1614 = vsel %vm1613, %v1357, -1e+30
    %v1615 = vsel %vm1613, %v1360, -1e+30
    %v1616 = vsel %vm1613, %v1365, -1e+30
    %v1617 = vsel %vm1613, %v1368, -1e+30
    %v1618 = vsel %vm1613, %v1373, -1e+30
    %v1619 = vsel %vm1613, %v1376, -1e+30
    %v1620 = vsel %vm1613, %v1381, -1e+30
    %v1621 = vsel %vm1613, %v1384, -1e+30
    %v1622 = vsel %vm1613, %v1389, -1e+30
    %v1623 = vsel %vm1613, %v1392, -1e+30
    %v1624 = vsel %vm1613, %v1397, -1e+30
    %v1625 = vsel %vm1613, %v1400, -1e+30
    %v1626 = vsel %vm1613, %v1405, -1e+30
    %v1627 = vsel %vm1613, %v1408, -1e+30
    %v1628 = vsel %vm1613, %v1413, -1e+30
    %v1629 = vsel %vm1613, %v1416, -1e+30
    %v1630 = vsel %vm1613, %v1421, -1e+30
    %v1631 = vsel %vm1613, %v1424, -1e+30
    %v1632 = vsel %vm1613, %v1429, -1e+30
    %v1633 = vsel %vm1613, %v1432, -1e+30
    %v1634 = vsel %vm1613, %v1437, -1e+30
    %v1635 = vsel %vm1613, %v1440, -1e+30
    %v1636 = vsel %vm1613, %v1445, -1e+30
    %v1637 = vsel %vm1613, %v1448, -1e+30
    %v1638 = vsel %vm1613, %v1453, -1e+30
    %v1639 = vsel %vm1613, %v1456, -1e+30
    %v1640 = vsel %vm1613, %v1461, -1e+30
    %v1641 = vsel %vm1613, %v1464, -1e+30
    %v1642 = vsel %vm1613, %v1469, -1e+30
    %v1643 = vsel %vm1613, %v1472, -1e+30
    %v1644 = vsel %vm1613, %v1477, -1e+30
    %v1645 = vsel %vm1613, %v1480, -1e+30
    %v1646 = vsel %vm1613, %v1485, -1e+30
    %v1647 = vsel %vm1613, %v1488, -1e+30
    %v1648 = vsel %vm1613, %v1493, -1e+30
    %v1649 = vsel %vm1613, %v1496, -1e+30
    %v1650 = vsel %vm1613, %v1501, -1e+30
    %v1651 = vsel %vm1613, %v1504, -1e+30
    %v1652 = vsel %vm1613, %v1509, -1e+30
    %v1653 = vsel %vm1613, %v1512, -1e+30
    %v1654 = vsel %vm1613, %v1517, -1e+30
    %v1655 = vsel %vm1613, %v1520, -1e+30
    %v1656 = vsel %vm1613, %v1525, -1e+30
    %v1657 = vsel %vm1613, %v1528, -1e+30
    %v1658 = vsel %vm1613, %v1533, -1e+30
    %v1659 = vsel %vm1613, %v1536, -1e+30
    %v1660 = vsel %vm1613, %v1541, -1e+30
    %v1661 = vsel %vm1613, %v1544, -1e+30
    %v1662 = vsel %vm1613, %v1549, -1e+30
    %v1663 = vsel %vm1613, %v1552, -1e+30
    %v1664 = vsel %vm1613, %v1557, -1e+30
    %v1665 = vsel %vm1613, %v1560, -1e+30
    %v1666 = vsel %vm1613, %v1565, -1e+30
    %v1667 = vsel %vm1613, %v1568, -1e+30
    %v1668 = vsel %vm1613, %v1573, -1e+30
    %v1669 = vsel %vm1613, %v1576, -1e+30
    %v1670 = vsel %vm1613, %v1581, -1e+30
    %v1671 = vsel %vm1613, %v1584, -1e+30
    %v1672 = vsel %vm1613, %v1589, -1e+30
    %v1673 = vsel %vm1613, %v1592, -1e+30
    %v1674 = vsel %vm1613, %v1597, -1e+30
    %v1675 = vsel %vm1613, %v1600, -1e+30
    %v1676 = vsel %vm1613, %v1605, -1e+30
    %v1677 = vsel %vm1613, %v1608, -1e+30
    %1678 = vmax.xlane.f32.xlu0 %v1614
    %v1679 = vpop.xlane.xlu0 %1678
    %1680 = vmax.xlane.f32.xlu0 %v1615
    %v1681 = vpop.xlane.xlu0 %1680
    %1682 = vmax.xlane.f32.xlu0 %v1616
    %v1683 = vpop.xlane.xlu0 %1682
    %1684 = vmax.xlane.f32.xlu0 %v1617
    %v1685 = vpop.xlane.xlu0 %1684
    %1686 = vmax.xlane.f32.xlu0 %v1618
    %v1687 = vpop.xlane.xlu0 %1686
    %1688 = vmax.xlane.f32.xlu0 %v1619
    %v1689 = vpop.xlane.xlu0 %1688
    %1690 = vmax.xlane.f32.xlu0 %v1620
    %v1691 = vpop.xlane.xlu0 %1690
    %1692 = vmax.xlane.f32.xlu0 %v1621
    %v1693 = vpop.xlane.xlu0 %1692
    %1694 = vmax.xlane.f32.xlu0 %v1622
    %v1695 = vpop.xlane.xlu0 %1694
    %1696 = vmax.xlane.f32.xlu0 %v1623
    %v1697 = vpop.xlane.xlu0 %1696
    %1698 = vmax.xlane.f32.xlu0 %v1624
    %v1699 = vpop.xlane.xlu0 %1698
    %1700 = vmax.xlane.f32.xlu0 %v1625
    %v1701 = vpop.xlane.xlu0 %1700
    %1702 = vmax.xlane.f32.xlu0 %v1626
    %v1703 = vpop.xlane.xlu0 %1702
    %1704 = vmax.xlane.f32.xlu0 %v1627
    %v1705 = vpop.xlane.xlu0 %1704
    %1706 = vmax.xlane.f32.xlu0 %v1628
    %v1707 = vpop.xlane.xlu0 %1706
    %1708 = vmax.xlane.f32.xlu0 %v1629
    %v1709 = vpop.xlane.xlu0 %1708
    %1710 = vmax.xlane.f32.xlu0 %v1630
    %v1711 = vpop.xlane.xlu0 %1710
    %1712 = vmax.xlane.f32.xlu0 %v1631
    %v1713 = vpop.xlane.xlu0 %1712
    %1714 = vmax.xlane.f32.xlu0 %v1632
    %v1715 = vpop.xlane.xlu0 %1714
    %1716 = vmax.xlane.f32.xlu0 %v1633
    %v1717 = vpop.xlane.xlu0 %1716
    %1718 = vmax.xlane.f32.xlu0 %v1634
    %v1719 = vpop.xlane.xlu0 %1718
    %1720 = vmax.xlane.f32.xlu0 %v1635
    %v1721 = vpop.xlane.xlu0 %1720
    %1722 = vmax.xlane.f32.xlu0 %v1636
    %v1723 = vpop.xlane.xlu0 %1722
    %1724 = vmax.xlane.f32.xlu0 %v1637
    %v1725 = vpop.xlane.xlu0 %1724
    %1726 = vmax.xlane.f32.xlu0 %v1638
    %v1727 = vpop.xlane.xlu0 %1726
    %1728 = vmax.xlane.f32.xlu0 %v1639
    %v1729 = vpop.xlane.xlu0 %1728
    %1730 = vmax.xlane.f32.xlu0 %v1640
    %v1731 = vpop.xlane.xlu0 %1730
    %1732 = vmax.xlane.f32.xlu0 %v1641
    %v1733 = vpop.xlane.xlu0 %1732
    %1734 = vmax.xlane.f32.xlu0 %v1642
    %v1735 = vpop.xlane.xlu0 %1734
    %1736 = vmax.xlane.f32.xlu0 %v1643
    %v1737 = vpop.xlane.xlu0 %1736
    %1738 = vmax.xlane.f32.xlu0 %v1644
    %v1739 = vpop.xlane.xlu0 %1738
    %1740 = vmax.xlane.f32.xlu0 %v1645
    %v1741 = vpop.xlane.xlu0 %1740
    %1742 = vmax.xlane.f32.xlu0 %v1646
    %v1743 = vpop.xlane.xlu0 %1742
    %1744 = vmax.xlane.f32.xlu0 %v1647
    %v1745 = vpop.xlane.xlu0 %1744
    %1746 = vmax.xlane.f32.xlu0 %v1648
    %v1747 = vpop.xlane.xlu0 %1746
    %1748 = vmax.xlane.f32.xlu0 %v1649
    %v1749 = vpop.xlane.xlu0 %1748
    %1750 = vmax.xlane.f32.xlu0 %v1650
    %v1751 = vpop.xlane.xlu0 %1750
    %1752 = vmax.xlane.f32.xlu0 %v1651
    %v1753 = vpop.xlane.xlu0 %1752
    %1754 = vmax.xlane.f32.xlu0 %v1652
    %v1755 = vpop.xlane.xlu0 %1754
    %1756 = vmax.xlane.f32.xlu0 %v1653
    %v1757 = vpop.xlane.xlu0 %1756
    %1758 = vmax.xlane.f32.xlu0 %v1654
    %v1759 = vpop.xlane.xlu0 %1758
    %1760 = vmax.xlane.f32.xlu0 %v1655
    %v1761 = vpop.xlane.xlu0 %1760
    %1762 = vmax.xlane.f32.xlu0 %v1656
    %v1763 = vpop.xlane.xlu0 %1762
    %1764 = vmax.xlane.f32.xlu0 %v1657
    %v1765 = vpop.xlane.xlu0 %1764
    %1766 = vmax.xlane.f32.xlu0 %v1658
    %v1767 = vpop.xlane.xlu0 %1766
    %1768 = vmax.xlane.f32.xlu0 %v1659
    %v1769 = vpop.xlane.xlu0 %1768
    %1770 = vmax.xlane.f32.xlu0 %v1660
    %v1771 = vpop.xlane.xlu0 %1770
    %1772 = vmax.xlane.f32.xlu0 %v1661
    %v1773 = vpop.xlane.xlu0 %1772
    %1774 = vmax.xlane.f32.xlu0 %v1662
    %v1775 = vpop.xlane.xlu0 %1774
    %1776 = vmax.xlane.f32.xlu0 %v1663
    %v1777 = vpop.xlane.xlu0 %1776
    %1778 = vmax.xlane.f32.xlu0 %v1664
    %v1779 = vpop.xlane.xlu0 %1778
    %1780 = vmax.xlane.f32.xlu0 %v1665
    %v1781 = vpop.xlane.xlu0 %1780
    %1782 = vmax.xlane.f32.xlu0 %v1666
    %v1783 = vpop.xlane.xlu0 %1782
    %1784 = vmax.xlane.f32.xlu0 %v1667
    %v1785 = vpop.xlane.xlu0 %1784
    %1786 = vmax.xlane.f32.xlu0 %v1668
    %v1787 = vpop.xlane.xlu0 %1786
    %1788 = vmax.xlane.f32.xlu0 %v1669
    %v1789 = vpop.xlane.xlu0 %1788
    %1790 = vmax.xlane.f32.xlu0 %v1670
    %v1791 = vpop.xlane.xlu0 %1790
    %1792 = vmax.xlane.f32.xlu0 %v1671
    %v1793 = vpop.xlane.xlu0 %1792
    %1794 = vmax.xlane.f32.xlu0 %v1672
    %v1795 = vpop.xlane.xlu0 %1794
    %1796 = vmax.xlane.f32.xlu0 %v1673
    %v1797 = vpop.xlane.xlu0 %1796
    %1798 = vmax.xlane.f32.xlu0 %v1674
    %v1799 = vpop.xlane.xlu0 %1798
    %1800 = vmax.xlane.f32.xlu0 %v1675
    %v1801 = vpop.xlane.xlu0 %1800
    %1802 = vmax.xlane.f32.xlu0 %v1676
    %v1803 = vpop.xlane.xlu0 %1802
    %1804 = vmax.xlane.f32.xlu0 %v1677
    %v1805 = vpop.xlane.xlu0 %1804
    %v1806 = vsub.f32 %v1614, %v1679
    %v1807 = vsub.f32 %v1615, %v1681
    %v1808 = vsub.f32 %v1616, %v1683
    %v1809 = vsub.f32 %v1617, %v1685
    %v1810 = vsub.f32 %v1618, %v1687
    %v1811 = vsub.f32 %v1619, %v1689
    %v1812 = vsub.f32 %v1620, %v1691
    %v1813 = vsub.f32 %v1621, %v1693
    %v1814 = vsub.f32 %v1622, %v1695
    %v1815 = vsub.f32 %v1623, %v1697
    %v1816 = vsub.f32 %v1624, %v1699
    %v1817 = vsub.f32 %v1625, %v1701
    %v1818 = vsub.f32 %v1626, %v1703
    %v1819 = vsub.f32 %v1627, %v1705
    %v1820 = vsub.f32 %v1628, %v1707
    %v1821 = vsub.f32 %v1629, %v1709
    %v1822 = vsub.f32 %v1630, %v1711
    %v1823 = vsub.f32 %v1631, %v1713
    %v1824 = vsub.f32 %v1632, %v1715
    %v1825 = vsub.f32 %v1633, %v1717
    %v1826 = vsub.f32 %v1634, %v1719
    %v1827 = vsub.f32 %v1635, %v1721
    %v1828 = vsub.f32 %v1636, %v1723
    %v1829 = vsub.f32 %v1637, %v1725
    %v1830 = vsub.f32 %v1638, %v1727
    %v1831 = vsub.f32 %v1639, %v1729
    %v1832 = vsub.f32 %v1640, %v1731
    %v1833 = vsub.f32 %v1641, %v1733
    %v1834 = vsub.f32 %v1642, %v1735
    %v1835 = vsub.f32 %v1643, %v1737
    %v1836 = vsub.f32 %v1644, %v1739
    %v1837 = vsub.f32 %v1645, %v1741
    %v1838 = vsub.f32 %v1646, %v1743
    %v1839 = vsub.f32 %v1647, %v1745
    %v1840 = vsub.f32 %v1648, %v1747
    %v1841 = vsub.f32 %v1649, %v1749
    %v1842 = vsub.f32 %v1650, %v1751
    %v1843 = vsub.f32 %v1651, %v1753
    %v1844 = vsub.f32 %v1652, %v1755
    %v1845 = vsub.f32 %v1653, %v1757
    %v1846 = vsub.f32 %v1654, %v1759
    %v1847 = vsub.f32 %v1655, %v1761
    %v1848 = vsub.f32 %v1656, %v1763
    %v1849 = vsub.f32 %v1657, %v1765
    %v1850 = vsub.f32 %v1658, %v1767
    %v1851 = vsub.f32 %v1659, %v1769
    %v1852 = vsub.f32 %v1660, %v1771
    %v1853 = vsub.f32 %v1661, %v1773
    %v1854 = vsub.f32 %v1662, %v1775
    %v1855 = vsub.f32 %v1663, %v1777
    %v1856 = vsub.f32 %v1664, %v1779
    %v1857 = vsub.f32 %v1665, %v1781
    %v1858 = vsub.f32 %v1666, %v1783
    %v1859 = vsub.f32 %v1667, %v1785
    %v1860 = vsub.f32 %v1668, %v1787
    %v1861 = vsub.f32 %v1669, %v1789
    %v1862 = vsub.f32 %v1670, %v1791
    %v1863 = vsub.f32 %v1671, %v1793
    %v1864 = vsub.f32 %v1672, %v1795
    %v1865 = vsub.f32 %v1673, %v1797
    %v1866 = vsub.f32 %v1674, %v1799
    %v1867 = vsub.f32 %v1675, %v1801
    %v1868 = vsub.f32 %v1676, %v1803
    %v1869 = vsub.f32 %v1677, %v1805
    %v1870 = vmul.f32 %v1806, 1.442695
    %v1871 = vpow.pop %v1870
    %v1872 = vmul.f32 %v1807, 1.442695
    %v1873 = vpow.pop %v1872
    %v1874 = vmul.f32 %v1808, 1.442695
    %v1875 = vpow.pop %v1874
    %v1876 = vmul.f32 %v1809, 1.442695
    %v1877 = vpow.pop %v1876
    %v1878 = vmul.f32 %v1810, 1.442695
    %v1879 = vpow.pop %v1878
    %v1880 = vmul.f32 %v1811, 1.442695
    %v1881 = vpow.pop %v1880
    %v1882 = vmul.f32 %v1812, 1.442695
    %v1883 = vpow.pop %v1882
    %v1884 = vmul.f32 %v1813, 1.442695
    %v1885 = vpow.pop %v1884
    %v1886 = vmul.f32 %v1814, 1.442695
    %v1887 = vpow.pop %v1886
    %v1888 = vmul.f32 %v1815, 1.442695
    %v1889 = vpow.pop %v1888
    %v1890 = vmul.f32 %v1816, 1.442695
    %v1891 = vpow.pop %v1890
    %v1892 = vmul.f32 %v1817, 1.442695
    %v1893 = vpow.pop %v1892
    %v1894 = vmul.f32 %v1818, 1.442695
    %v1895 = vpow.pop %v1894
    %v1896 = vmul.f32 %v1819, 1.442695
    %v1897 = vpow.pop %v1896
    %v1898 = vmul.f32 %v1820, 1.442695
    %v1899 = vpow.pop %v1898
    %v1900 = vmul.f32 %v1821, 1.442695
    %v1901 = vpow.pop %v1900
    %v1902 = vmul.f32 %v1822, 1.442695
    %v1903 = vpow.pop %v1902
    %v1904 = vmul.f32 %v1823, 1.442695
    %v1905 = vpow.pop %v1904
    %v1906 = vmul.f32 %v1824, 1.442695
    %v1907 = vpow.pop %v1906
    %v1908 = vmul.f32 %v1825, 1.442695
    %v1909 = vpow.pop %v1908
    %v1910 = vmul.f32 %v1826, 1.442695
    %v1911 = vpow.pop %v1910
    %v1912 = vmul.f32 %v1827, 1.442695
    %v1913 = vpow.pop %v1912
    %v1914 = vmul.f32 %v1828, 1.442695
    %v1915 = vpow.pop %v1914
    %v1916 = vmul.f32 %v1829, 1.442695
    %v1917 = vpow.pop %v1916
    %v1918 = vmul.f32 %v1830, 1.442695
    %v1919 = vpow.pop %v1918
    %v1920 = vmul.f32 %v1831, 1.442695
    %v1921 = vpow.pop %v1920
    %v1922 = vmul.f32 %v1832, 1.442695
    %v1923 = vpow.pop %v1922
    %v1924 = vmul.f32 %v1833, 1.442695
    %v1925 = vpow.pop %v1924
    %v1926 = vmul.f32 %v1834, 1.442695
    %v1927 = vpow.pop %v1926
    %v1928 = vmul.f32 %v1835, 1.442695
    %v1929 = vpow.pop %v1928
    %v1930 = vmul.f32 %v1836, 1.442695
    %v1931 = vpow.pop %v1930
    %v1932 = vmul.f32 %v1837, 1.442695
    %v1933 = vpow.pop %v1932
    %v1934 = vmul.f32 %v1838, 1.442695
    %v1935 = vpow.pop %v1934
    %v1936 = vmul.f32 %v1839, 1.442695
    %v1937 = vpow.pop %v1936
    %v1938 = vmul.f32 %v1840, 1.442695
    %v1939 = vpow.pop %v1938
    %v1940 = vmul.f32 %v1841, 1.442695
    %v1941 = vpow.pop %v1940
    %v1942 = vmul.f32 %v1842, 1.442695
    %v1943 = vpow.pop %v1942
    %v1944 = vmul.f32 %v1843, 1.442695
    %v1945 = vpow.pop %v1944
    %v1946 = vmul.f32 %v1844, 1.442695
    %v1947 = vpow.pop %v1946
    %v1948 = vmul.f32 %v1845, 1.442695
    %v1949 = vpow.pop %v1948
    %v1950 = vmul.f32 %v1846, 1.442695
    %v1951 = vpow.pop %v1950
    %v1952 = vmul.f32 %v1847, 1.442695
    %v1953 = vpow.pop %v1952
    %v1954 = vmul.f32 %v1848, 1.442695
    %v1955 = vpow.pop %v1954
    %v1956 = vmul.f32 %v1849, 1.442695
    %v1957 = vpow.pop %v1956
    %v1958 = vmul.f32 %v1850, 1.442695
    %v1959 = vpow.pop %v1958
    %v1960 = vmul.f32 %v1851, 1.442695
    %v1961 = vpow.pop %v1960
    %v1962 = vmul.f32 %v1852, 1.442695
    %v1963 = vpow.pop %v1962
    %v1964 = vmul.f32 %v1853, 1.442695
    %v1965 = vpow.pop %v1964
    %v1966 = vmul.f32 %v1854, 1.442695
    %v1967 = vpow.pop %v1966
    %v1968 = vmul.f32 %v1855, 1.442695
    %v1969 = vpow.pop %v1968
    %v1970 = vmul.f32 %v1856, 1.442695
    %v1971 = vpow.pop %v1970
    %v1972 = vmul.f32 %v1857, 1.442695
    %v1973 = vpow.pop %v1972
    %v1974 = vmul.f32 %v1858, 1.442695
    %v1975 = vpow.pop %v1974
    %v1976 = vmul.f32 %v1859, 1.442695
    %v1977 = vpow.pop %v1976
    %v1978 = vmul.f32 %v1860, 1.442695
    %v1979 = vpow.pop %v1978
    %v1980 = vmul.f32 %v1861, 1.442695
    %v1981 = vpow.pop %v1980
    %v1982 = vmul.f32 %v1862, 1.442695
    %v1983 = vpow.pop %v1982
    %v1984 = vmul.f32 %v1863, 1.442695
    %v1985 = vpow.pop %v1984
    %v1986 = vmul.f32 %v1864, 1.442695
    %v1987 = vpow.pop %v1986
    %v1988 = vmul.f32 %v1865, 1.442695
    %v1989 = vpow.pop %v1988
    %v1990 = vmul.f32 %v1866, 1.442695
    %v1991 = vpow.pop %v1990
    %v1992 = vmul.f32 %v1867, 1.442695
    %v1993 = vpow.pop %v1992
    %v1994 = vmul.f32 %v1868, 1.442695
    %v1995 = vpow.pop %v1994
    %v1996 = vmul.f32 %v1869, 1.442695
    %v1997 = vpow.pop %v1996
    %1998 = vadd.xlane.f32.xlu0 %v1871
    %v1999 = vpop.xlane.xlu0 %1998
    %2000 = vadd.xlane.f32.xlu0 %v1873
    %v2001 = vpop.xlane.xlu0 %2000
    %2002 = vadd.xlane.f32.xlu0 %v1875
    %v2003 = vpop.xlane.xlu0 %2002
    %2004 = vadd.xlane.f32.xlu0 %v1877
    %v2005 = vpop.xlane.xlu0 %2004
    %2006 = vadd.xlane.f32.xlu0 %v1879
    %v2007 = vpop.xlane.xlu0 %2006
    %2008 = vadd.xlane.f32.xlu0 %v1881
    %v2009 = vpop.xlane.xlu0 %2008
    %2010 = vadd.xlane.f32.xlu0 %v1883
    %v2011 = vpop.xlane.xlu0 %2010
    %2012 = vadd.xlane.f32.xlu0 %v1885
    %v2013 = vpop.xlane.xlu0 %2012
    %2014 = vadd.xlane.f32.xlu0 %v1887
    %v2015 = vpop.xlane.xlu0 %2014
    %2016 = vadd.xlane.f32.xlu0 %v1889
    %v2017 = vpop.xlane.xlu0 %2016
    %2018 = vadd.xlane.f32.xlu0 %v1891
    %v2019 = vpop.xlane.xlu0 %2018
    %2020 = vadd.xlane.f32.xlu0 %v1893
    %v2021 = vpop.xlane.xlu0 %2020
    %2022 = vadd.xlane.f32.xlu0 %v1895
    %v2023 = vpop.xlane.xlu0 %2022
    %2024 = vadd.xlane.f32.xlu0 %v1897
    %v2025 = vpop.xlane.xlu0 %2024
    %2026 = vadd.xlane.f32.xlu0 %v1899
    %v2027 = vpop.xlane.xlu0 %2026
    %2028 = vadd.xlane.f32.xlu0 %v1901
    %v2029 = vpop.xlane.xlu0 %2028
    %2030 = vadd.xlane.f32.xlu0 %v1903
    %v2031 = vpop.xlane.xlu0 %2030
    %2032 = vadd.xlane.f32.xlu0 %v1905
    %v2033 = vpop.xlane.xlu0 %2032
    %2034 = vadd.xlane.f32.xlu0 %v1907
    %v2035 = vpop.xlane.xlu0 %2034
    %2036 = vadd.xlane.f32.xlu0 %v1909
    %v2037 = vpop.xlane.xlu0 %2036
    %2038 = vadd.xlane.f32.xlu0 %v1911
    %v2039 = vpop.xlane.xlu0 %2038
    %2040 = vadd.xlane.f32.xlu0 %v1913
    %v2041 = vpop.xlane.xlu0 %2040
    %2042 = vadd.xlane.f32.xlu0 %v1915
    %v2043 = vpop.xlane.xlu0 %2042
    %2044 = vadd.xlane.f32.xlu0 %v1917
    %v2045 = vpop.xlane.xlu0 %2044
    %2046 = vadd.xlane.f32.xlu0 %v1919
    %v2047 = vpop.xlane.xlu0 %2046
    %2048 = vadd.xlane.f32.xlu0 %v1921
    %v2049 = vpop.xlane.xlu0 %2048
    %2050 = vadd.xlane.f32.xlu0 %v1923
    %v2051 = vpop.xlane.xlu0 %2050
    %2052 = vadd.xlane.f32.xlu0 %v1925
    %v2053 = vpop.xlane.xlu0 %2052
    %2054 = vadd.xlane.f32.xlu0 %v1927
    %v2055 = vpop.xlane.xlu0 %2054
    %2056 = vadd.xlane.f32.xlu0 %v1929
    %v2057 = vpop.xlane.xlu0 %2056
    %2058 = vadd.xlane.f32.xlu0 %v1931
    %v2059 = vpop.xlane.xlu0 %2058
    %2060 = vadd.xlane.f32.xlu0 %v1933
    %v2061 = vpop.xlane.xlu0 %2060
    %2062 = vadd.xlane.f32.xlu0 %v1935
    %v2063 = vpop.xlane.xlu0 %2062
    %2064 = vadd.xlane.f32.xlu0 %v1937
    %v2065 = vpop.xlane.xlu0 %2064
    %2066 = vadd.xlane.f32.xlu0 %v1939
    %v2067 = vpop.xlane.xlu0 %2066
    %2068 = vadd.xlane.f32.xlu0 %v1941
    %v2069 = vpop.xlane.xlu0 %2068
    %2070 = vadd.xlane.f32.xlu0 %v1943
    %v2071 = vpop.xlane.xlu0 %2070
    %2072 = vadd.xlane.f32.xlu0 %v1945
    %v2073 = vpop.xlane.xlu0 %2072
    %2074 = vadd.xlane.f32.xlu0 %v1947
    %v2075 = vpop.xlane.xlu0 %2074
    %2076 = vadd.xlane.f32.xlu0 %v1949
    %v2077 = vpop.xlane.xlu0 %2076
    %2078 = vadd.xlane.f32.xlu0 %v1951
    %v2079 = vpop.xlane.xlu0 %2078
    %2080 = vadd.xlane.f32.xlu0 %v1953
    %v2081 = vpop.xlane.xlu0 %2080
    %2082 = vadd.xlane.f32.xlu0 %v1955
    %v2083 = vpop.xlane.xlu0 %2082
    %2084 = vadd.xlane.f32.xlu0 %v1957
    %v2085 = vpop.xlane.xlu0 %2084
    %2086 = vadd.xlane.f32.xlu0 %v1959
    %v2087 = vpop.xlane.xlu0 %2086
    %2088 = vadd.xlane.f32.xlu0 %v1961
    %v2089 = vpop.xlane.xlu0 %2088
    %2090 = vadd.xlane.f32.xlu0 %v1963
    %v2091 = vpop.xlane.xlu0 %2090
    %2092 = vadd.xlane.f32.xlu0 %v1965
    %v2093 = vpop.xlane.xlu0 %2092
    %2094 = vadd.xlane.f32.xlu0 %v1967
    %v2095 = vpop.xlane.xlu0 %2094
    %2096 = vadd.xlane.f32.xlu0 %v1969
    %v2097 = vpop.xlane.xlu0 %2096
    %2098 = vadd.xlane.f32.xlu0 %v1971
    %v2099 = vpop.xlane.xlu0 %2098
    %2100 = vadd.xlane.f32.xlu0 %v1973
    %v2101 = vpop.xlane.xlu0 %2100
    %2102 = vadd.xlane.f32.xlu0 %v1975
    %v2103 = vpop.xlane.xlu0 %2102
    %2104 = vadd.xlane.f32.xlu0 %v1977
    %v2105 = vpop.xlane.xlu0 %2104
    %2106 = vadd.xlane.f32.xlu0 %v1979
    %v2107 = vpop.xlane.xlu0 %2106
    %2108 = vadd.xlane.f32.xlu0 %v1981
    %v2109 = vpop.xlane.xlu0 %2108
    %2110 = vadd.xlane.f32.xlu0 %v1983
    %v2111 = vpop.xlane.xlu0 %2110
    %2112 = vadd.xlane.f32.xlu0 %v1985
    %v2113 = vpop.xlane.xlu0 %2112
    %2114 = vadd.xlane.f32.xlu0 %v1987
    %v2115 = vpop.xlane.xlu0 %2114
    %2116 = vadd.xlane.f32.xlu0 %v1989
    %v2117 = vpop.xlane.xlu0 %2116
    %2118 = vadd.xlane.f32.xlu0 %v1991
    %v2119 = vpop.xlane.xlu0 %2118
    %2120 = vadd.xlane.f32.xlu0 %v1993
    %v2121 = vpop.xlane.xlu0 %2120
    %2122 = vadd.xlane.f32.xlu0 %v1995
    %v2123 = vpop.xlane.xlu0 %2122
    %2124 = vadd.xlane.f32.xlu0 %v1997
    %v2125 = vpop.xlane.xlu0 %2124
    %v2126 = vlog2.pop %v1999
    %v2127 = vmul.f32 %v2126, 0.6931472
    %v2128 = vlog2.pop %v2001
    %v2129 = vmul.f32 %v2128, 0.6931472
    %v2130 = vlog2.pop %v2003
    %v2131 = vmul.f32 %v2130, 0.6931472
    %v2132 = vlog2.pop %v2005
    %v2133 = vmul.f32 %v2132, 0.6931472
    %v2134 = vlog2.pop %v2007
    %v2135 = vmul.f32 %v2134, 0.6931472
    %v2136 = vlog2.pop %v2009
    %v2137 = vmul.f32 %v2136, 0.6931472
    %v2138 = vlog2.pop %v2011
    %v2139 = vmul.f32 %v2138, 0.6931472
    %v2140 = vlog2.pop %v2013
    %v2141 = vmul.f32 %v2140, 0.6931472
    %v2142 = vlog2.pop %v2015
    %v2143 = vmul.f32 %v2142, 0.6931472
    %v2144 = vlog2.pop %v2017
    %v2145 = vmul.f32 %v2144, 0.6931472
    %v2146 = vlog2.pop %v2019
    %v2147 = vmul.f32 %v2146, 0.6931472
    %v2148 = vlog2.pop %v2021
    %v2149 = vmul.f32 %v2148, 0.6931472
    %v2150 = vlog2.pop %v2023
    %v2151 = vmul.f32 %v2150, 0.6931472
    %v2152 = vlog2.pop %v2025
    %v2153 = vmul.f32 %v2152, 0.6931472
    %v2154 = vlog2.pop %v2027
    %v2155 = vmul.f32 %v2154, 0.6931472
    %v2156 = vlog2.pop %v2029
    %v2157 = vmul.f32 %v2156, 0.6931472
    %v2158 = vlog2.pop %v2031
    %v2159 = vmul.f32 %v2158, 0.6931472
    %v2160 = vlog2.pop %v2033
    %v2161 = vmul.f32 %v2160, 0.6931472
    %v2162 = vlog2.pop %v2035
    %v2163 = vmul.f32 %v2162, 0.6931472
    %v2164 = vlog2.pop %v2037
    %v2165 = vmul.f32 %v2164, 0.6931472
    %v2166 = vlog2.pop %v2039
    %v2167 = vmul.f32 %v2166, 0.6931472
    %v2168 = vlog2.pop %v2041
    %v2169 = vmul.f32 %v2168, 0.6931472
    %v2170 = vlog2.pop %v2043
    %v2171 = vmul.f32 %v2170, 0.6931472
    %v2172 = vlog2.pop %v2045
    %v2173 = vmul.f32 %v2172, 0.6931472
    %v2174 = vlog2.pop %v2047
    %v2175 = vmul.f32 %v2174, 0.6931472
    %v2176 = vlog2.pop %v2049
    %v2177 = vmul.f32 %v2176, 0.6931472
    %v2178 = vlog2.pop %v2051
    %v2179 = vmul.f32 %v2178, 0.6931472
    %v2180 = vlog2.pop %v2053
    %v2181 = vmul.f32 %v2180, 0.6931472
    %v2182 = vlog2.pop %v2055
    %v2183 = vmul.f32 %v2182, 0.6931472
    %v2184 = vlog2.pop %v2057
    %v2185 = vmul.f32 %v2184, 0.6931472
    %v2186 = vlog2.pop %v2059
    %v2187 = vmul.f32 %v2186, 0.6931472
    %v2188 = vlog2.pop %v2061
    %v2189 = vmul.f32 %v2188, 0.6931472
    %v2190 = vlog2.pop %v2063
    %v2191 = vmul.f32 %v2190, 0.6931472
    %v2192 = vlog2.pop %v2065
    %v2193 = vmul.f32 %v2192, 0.6931472
    %v2194 = vlog2.pop %v2067
    %v2195 = vmul.f32 %v2194, 0.6931472
    %v2196 = vlog2.pop %v2069
    %v2197 = vmul.f32 %v2196, 0.6931472
    %v2198 = vlog2.pop %v2071
    %v2199 = vmul.f32 %v2198, 0.6931472
    %v2200 = vlog2.pop %v2073
    %v2201 = vmul.f32 %v2200, 0.6931472
    %v2202 = vlog2.pop %v2075
    %v2203 = vmul.f32 %v2202, 0.6931472
    %v2204 = vlog2.pop %v2077
    %v2205 = vmul.f32 %v2204, 0.6931472
    %v2206 = vlog2.pop %v2079
    %v2207 = vmul.f32 %v2206, 0.6931472
    %v2208 = vlog2.pop %v2081
    %v2209 = vmul.f32 %v2208, 0.6931472
    %v2210 = vlog2.pop %v2083
    %v2211 = vmul.f32 %v2210, 0.6931472
    %v2212 = vlog2.pop %v2085
    %v2213 = vmul.f32 %v2212, 0.6931472
    %v2214 = vlog2.pop %v2087
    %v2215 = vmul.f32 %v2214, 0.6931472
    %v2216 = vlog2.pop %v2089
    %v2217 = vmul.f32 %v2216, 0.6931472
    %v2218 = vlog2.pop %v2091
    %v2219 = vmul.f32 %v2218, 0.6931472
    %v2220 = vlog2.pop %v2093
    %v2221 = vmul.f32 %v2220, 0.6931472
    %v2222 = vlog2.pop %v2095
    %v2223 = vmul.f32 %v2222, 0.6931472
    %v2224 = vlog2.pop %v2097
    %v2225 = vmul.f32 %v2224, 0.6931472
    %v2226 = vlog2.pop %v2099
    %v2227 = vmul.f32 %v2226, 0.6931472
    %v2228 = vlog2.pop %v2101
    %v2229 = vmul.f32 %v2228, 0.6931472
    %v2230 = vlog2.pop %v2103
    %v2231 = vmul.f32 %v2230, 0.6931472
    %v2232 = vlog2.pop %v2105
    %v2233 = vmul.f32 %v2232, 0.6931472
    %v2234 = vlog2.pop %v2107
    %v2235 = vmul.f32 %v2234, 0.6931472
    %v2236 = vlog2.pop %v2109
    %v2237 = vmul.f32 %v2236, 0.6931472
    %v2238 = vlog2.pop %v2111
    %v2239 = vmul.f32 %v2238, 0.6931472
    %v2240 = vlog2.pop %v2113
    %v2241 = vmul.f32 %v2240, 0.6931472
    %v2242 = vlog2.pop %v2115
    %v2243 = vmul.f32 %v2242, 0.6931472
    %v2244 = vlog2.pop %v2117
    %v2245 = vmul.f32 %v2244, 0.6931472
    %v2246 = vlog2.pop %v2119
    %v2247 = vmul.f32 %v2246, 0.6931472
    %v2248 = vlog2.pop %v2121
    %v2249 = vmul.f32 %v2248, 0.6931472
    %v2250 = vlog2.pop %v2123
    %v2251 = vmul.f32 %v2250, 0.6931472
    %v2252 = vlog2.pop %v2125
    %v2253 = vmul.f32 %v2252, 0.6931472
    %v2254 = vsub.f32 %v1806, %v2127
    %v2255 = vsub.f32 %v1807, %v2129
    %v2256 = vsub.f32 %v1808, %v2131
    %v2257 = vsub.f32 %v1809, %v2133
    %v2258 = vsub.f32 %v1810, %v2135
    %v2259 = vsub.f32 %v1811, %v2137
    %v2260 = vsub.f32 %v1812, %v2139
    %v2261 = vsub.f32 %v1813, %v2141
    %v2262 = vsub.f32 %v1814, %v2143
    %v2263 = vsub.f32 %v1815, %v2145
    %v2264 = vsub.f32 %v1816, %v2147
    %v2265 = vsub.f32 %v1817, %v2149
    %v2266 = vsub.f32 %v1818, %v2151
    %v2267 = vsub.f32 %v1819, %v2153
    %v2268 = vsub.f32 %v1820, %v2155
    %v2269 = vsub.f32 %v1821, %v2157
    %v2270 = vsub.f32 %v1822, %v2159
    %v2271 = vsub.f32 %v1823, %v2161
    %v2272 = vsub.f32 %v1824, %v2163
    %v2273 = vsub.f32 %v1825, %v2165
    %v2274 = vsub.f32 %v1826, %v2167
    %v2275 = vsub.f32 %v1827, %v2169
    %v2276 = vsub.f32 %v1828, %v2171
    %v2277 = vsub.f32 %v1829, %v2173
    %v2278 = vsub.f32 %v1830, %v2175
    %v2279 = vsub.f32 %v1831, %v2177
    %v2280 = vsub.f32 %v1832, %v2179
    %v2281 = vsub.f32 %v1833, %v2181
    %v2282 = vsub.f32 %v1834, %v2183
    %v2283 = vsub.f32 %v1835, %v2185
    %v2284 = vsub.f32 %v1836, %v2187
    %v2285 = vsub.f32 %v1837, %v2189
    %v2286 = vsub.f32 %v1838, %v2191
    %v2287 = vsub.f32 %v1839, %v2193
    %v2288 = vsub.f32 %v1840, %v2195
    %v2289 = vsub.f32 %v1841, %v2197
    %v2290 = vsub.f32 %v1842, %v2199
    %v2291 = vsub.f32 %v1843, %v2201
    %v2292 = vsub.f32 %v1844, %v2203
    %v2293 = vsub.f32 %v1845, %v2205
    %v2294 = vsub.f32 %v1846, %v2207
    %v2295 = vsub.f32 %v1847, %v2209
    %v2296 = vsub.f32 %v1848, %v2211
    %v2297 = vsub.f32 %v1849, %v2213
    %v2298 = vsub.f32 %v1850, %v2215
    %v2299 = vsub.f32 %v1851, %v2217
    %v2300 = vsub.f32 %v1852, %v2219
    %v2301 = vsub.f32 %v1853, %v2221
    %v2302 = vsub.f32 %v1854, %v2223
    %v2303 = vsub.f32 %v1855, %v2225
    %v2304 = vsub.f32 %v1856, %v2227
    %v2305 = vsub.f32 %v1857, %v2229
    %v2306 = vsub.f32 %v1858, %v2231
    %v2307 = vsub.f32 %v1859, %v2233
    %v2308 = vsub.f32 %v1860, %v2235
    %v2309 = vsub.f32 %v1861, %v2237
    %v2310 = vsub.f32 %v1862, %v2239
    %v2311 = vsub.f32 %v1863, %v2241
    %v2312 = vsub.f32 %v1864, %v2243
    %v2313 = vsub.f32 %v1865, %v2245
    %v2314 = vsub.f32 %v1866, %v2247
    %v2315 = vsub.f32 %v1867, %v2249
    %v2316 = vsub.f32 %v1868, %v2251
    %v2317 = vsub.f32 %v1869, %v2253
    %2318 = vst [vmem:[#allocation10] sm:$0xff] %v2254
    %2319 = vst [vmem:[#allocation10 + $0x8] sm:$0xff] %v2255
    %2320 = vst [vmem:[#allocation10 + $0x10] sm:$0xff] %v2256
    %2321 = vst [vmem:[#allocation10 + $0x18] sm:$0xff] %v2257
    %2322 = vst [vmem:[#allocation10 + $0x20] sm:$0xff] %v2258
    %2323 = vst [vmem:[#allocation10 + $0x28] sm:$0xff] %v2259
    %2324 = vst [vmem:[#allocation10 + $0x30] sm:$0xff] %v2260
    %2325 = vst [vmem:[#allocation10 + $0x38] sm:$0xff] %v2261
    %2326 = vst [vmem:[#allocation10 + $0x40] sm:$0xff] %v2262
    %2327 = vst [vmem:[#allocation10 + $0x48] sm:$0xff] %v2263
    %2328 = vst [vmem:[#allocation10 + $0x50] sm:$0xff] %v2264
    %2329 = vst [vmem:[#allocation10 + $0x58] sm:$0xff] %v2265
    %2330 = vst [vmem:[#allocation10 + $0x60] sm:$0xff] %v2266
    %2331 = vst [vmem:[#allocation10 + $0x68] sm:$0xff] %v2267
    %2332 = vst [vmem:[#allocation10 + $0x70] sm:$0xff] %v2268
    %2333 = vst [vmem:[#allocation10 + $0x78] sm:$0xff] %v2269
    %2334 = vst [vmem:[#allocation10 + $0x80] sm:$0xff] %v2270
    %2335 = vst [vmem:[#allocation10 + $0x88] sm:$0xff] %v2271
    %2336 = vst [vmem:[#allocation10 + $0x90] sm:$0xff] %v2272
    %2337 = vst [vmem:[#allocation10 + $0x98] sm:$0xff] %v2273
    %2338 = vst [vmem:[#allocation10 + $0xa0] sm:$0xff] %v2274
    %2339 = vst [vmem:[#allocation10 + $0xa8] sm:$0xff] %v2275
    %2340 = vst [vmem:[#allocation10 + $0xb0] sm:$0xff] %v2276
    %2341 = vst [vmem:[#allocation10 + $0xb8] sm:$0xff] %v2277
    %2342 = vst [vmem:[#allocation10 + $0xc0] sm:$0xff] %v2278
    %2343 = vst [vmem:[#allocation10 + $0xc8] sm:$0xff] %v2279
    %2344 = vst [vmem:[#allocation10 + $0xd0] sm:$0xff] %v2280
    %2345 = vst [vmem:[#allocation10 + $0xd8] sm:$0xff] %v2281
    %2346 = vst [vmem:[#allocation10 + $0xe0] sm:$0xff] %v2282
    %2347 = vst [vmem:[#allocation10 + $0xe8] sm:$0xff] %v2283
    %2348 = vst [vmem:[#allocation10 + $0xf0] sm:$0xff] %v2284
    %2349 = vst [vmem:[#allocation10 + $0xf8] sm:$0xff] %v2285
    %2350 = vst [vmem:[#allocation10 + $0x100] sm:$0xff] %v2286
    %2351 = vst [vmem:[#allocation10 + $0x108] sm:$0xff] %v2287
    %2352 = vst [vmem:[#allocation10 + $0x110] sm:$0xff] %v2288
    %2353 = vst [vmem:[#allocation10 + $0x118] sm:$0xff] %v2289
    %2354 = vst [vmem:[#allocation10 + $0x120] sm:$0xff] %v2290
    %2355 = vst [vmem:[#allocation10 + $0x128] sm:$0xff] %v2291
    %2356 = vst [vmem:[#allocation10 + $0x130] sm:$0xff] %v2292
    %2357 = vst [vmem:[#allocation10 + $0x138] sm:$0xff] %v2293
    %2358 = vst [vmem:[#allocation10 + $0x140] sm:$0xff] %v2294
    %2359 = vst [vmem:[#allocation10 + $0x148] sm:$0xff] %v2295
    %2360 = vst [vmem:[#allocation10 + $0x150] sm:$0xff] %v2296
    %2361 = vst [vmem:[#allocation10 + $0x158] sm:$0xff] %v2297
    %2362 = vst [vmem:[#allocation10 + $0x160] sm:$0xff] %v2298
    %2363 = vst [vmem:[#allocation10 + $0x168] sm:$0xff] %v2299
    %2364 = vst [vmem:[#allocation10 + $0x170] sm:$0xff] %v2300
    %2365 = vst [vmem:[#allocation10 + $0x178] sm:$0xff] %v2301
    %2366 = vst [vmem:[#allocation10 + $0x180] sm:$0xff] %v2302
    %2367 = vst [vmem:[#allocation10 + $0x188] sm:$0xff] %v2303
    %2368 = vst [vmem:[#allocation10 + $0x190] sm:$0xff] %v2304
    %2369 = vst [vmem:[#allocation10 + $0x198] sm:$0xff] %v2305
    %2370 = vst [vmem:[#allocation10 + $0x1a0] sm:$0xff] %v2306
    %2371 = vst [vmem:[#allocation10 + $0x1a8] sm:$0xff] %v2307
    %2372 = vst [vmem:[#allocation10 + $0x1b0] sm:$0xff] %v2308
    %2373 = vst [vmem:[#allocation10 + $0x1b8] sm:$0xff] %v2309
    %2374 = vst [vmem:[#allocation10 + $0x1c0] sm:$0xff] %v2310
    %2375 = vst [vmem:[#allocation10 + $0x1c8] sm:$0xff] %v2311
    %2376 = vst [vmem:[#allocation10 + $0x1d0] sm:$0xff] %v2312
    %2377 = vst [vmem:[#allocation10 + $0x1d8] sm:$0xff] %v2313
    %2378 = vst [vmem:[#allocation10 + $0x1e0] sm:$0xff] %v2314
    %2379 = vst [vmem:[#allocation10 + $0x1e8] sm:$0xff] %v2315
    %2380 = vst [vmem:[#allocation10 + $0x1f0] sm:$0xff] %v2316
    %2381 = vst [vmem:[#allocation10 + $0x1f8] sm:$0xff] %v2317
    // Predicated region
    $region46: #{tpu_custom_call.1} parent=1 // pred_check
      _
    $region47: #{tpu_custom_call.1} parent=1 // pred_check_branch
      %2383 = sbr.rel (0) target = $region49
    $region48: #{tpu_custom_call.1} parent=1 // pred_region
      %s2385 = ssub.s32 8192, 8192
      %2386 = vsyncadd [#allocation4], %s2385
      %s2387 = sshll.u32 [#allocation10], 4
      %s2388 = int_to_ptr.vmem [resolvable:$true] %s2387
      %2393 = dma.vmem_to_hbm [thread:$0]  %s2388, 8192, %s7, [#allocation4], 128, 128, 8
    $region49: #{tpu_custom_call.1} parent=1 // pred_fallthru
      _
    // Predicated region
    $region50: #{tpu_custom_call.1} parent=1 // pred_check
      _
    $region51: #{tpu_custom_call.1} parent=1 // pred_check_branch
      %2395 = sbr.rel (0) target = $region53
    $region52: #{tpu_custom_call.1} parent=1 // pred_region
      %2396 = dma.done [#allocation4], 8192
    $region53: #{tpu_custom_call.1} parent=1 // pred_fallthru
      _
    %2397 = vsyncpa [#allocation3], 1
    %2398 = vsyncpa [#allocation6], 1
    %2399 = vsyncpa [#allocation9], 1
    %2400 = vsyncpa [#allocation4], 1

</llo_original>
